<compile_context>
chip_gen: v5e
topology: v5e:2x2
jax: 0.10.0
libtpu: 0.0.40
codegen_flags: <defaults>
</compile_context>

<pallas_src>
import jax
import jax.numpy as jnp
from jax import lax
from jax.experimental import pallas as pl
from jax.experimental.pallas import tpu as pltpu


_UNROLL_CHILD_LIMIT = 64  # fully Python-unroll the argmax loop below this N


def _round_up(x, m):
    return ((x + m - 1) // m) * m


def _sum_vector_kernel(prods_ref, weights_ref, ew_ref, wm_ref, sums_ref, idx_ref):
    # prods_ref  : [TB, N]     log-probs of concatenated product nodes (batch tile)
    # weights_ref: [N, S_pad]  log_softmax'd sum weights          (grid-invariant)
    # ew_ref     : [N, S_pad]  exp(weights - wm)                  (grid-invariant)
    # wm_ref     : [1, S_pad]  max_n weights[n, s]                (grid-invariant)
    # sums_ref   : [TB, S_pad] logsumexp over children
    # idx_ref    : [TB, S_pad] argmax child index (int32)
    prods = prods_ref[...].astype(jnp.float32)             # [TB, N]
    weights = weights_ref[...]                              # [N, S]
    n_children = weights.shape[0]

    # ---- logsumexp on the MXU -------------------------------------------
    # acc[b,s] = sum_n exp(prods[b,n]-pm[b]) * exp(weights[n,s]-wm[s]) is a
    # plain [TB,N] x [N,S] matmul.  HIGHEST precision keeps f32-level accuracy
    # (default bf16 MXU precision would violate the 1e-5 tolerance).
    pm = jnp.max(prods, axis=1, keepdims=True)              # [TB, 1]
    ep = jnp.exp(prods - pm)                                # [TB, N], in (0, 1]
    acc = jnp.dot(ep, ew_ref[...],
                  preferred_element_type=jnp.float32,
                  precision=lax.Precision.HIGHEST)          # [TB, S]
    sums_ref[...] = (pm + wm_ref[...] + jnp.log(acc)).astype(sums_ref.dtype)

    # ---- argmax over children (log domain, torch first-max tie-break) ----
    # One lane-broadcast of the prods column per child; two carried [TB,S]
    # arrays.  Strict '>' keeps torch.argmax's first-maximal-index behaviour.
    best_val = prods[:, 0:1] + weights[0:1, :]              # [TB, S]
    best_idx = jnp.zeros(best_val.shape, jnp.int32)         # [TB, S]
    if n_children <= _UNROLL_CHILD_LIMIT:
        for n in range(1, n_children):
            cand = prods[:, n:n + 1] + weights[n:n + 1, :]
            take = cand > best_val
            best_val = jnp.where(take, cand, best_val)
            best_idx = jnp.where(take, n, best_idx)
    else:
        # Chunk-unrolled loop keeps the live set bounded for big child counts.
        def body(n, carry):
            bv, bi = carry
            cand = (lax.dynamic_slice_in_dim(prods, n, 1, axis=1)
                    + lax.dynamic_slice_in_dim(weights, n, 1, axis=0))
            take = cand > bv
            return jnp.where(take, cand, bv), jnp.where(take, n, bi)
        best_val, best_idx = lax.fori_loop(1, n_children, body,
                                           (best_val, best_idx), unroll=8)
    # TODO(synk): optionally emit int16 indices (N < 32768) to cut output bytes.
    idx_ref[...] = best_idx


def sum_vector_forward(inputs, params, *, batch_tile=1024):
    """SumVector.forward (log-space, normalized sums).

    inputs: list of [B, size_i] log-probability arrays (product vectors).
    params: [N, S] raw sum parameters, N = sum(size_i), S = num_sums.
    Returns (sums [B, S], max_child_idx [B, S] int32).
    """
    prods = jnp.concatenate(inputs, axis=1)                 # [B, N]
    B, N = prods.shape
    n_p, S = params.shape
    assert N == n_p

    # Grid-invariant weight preprocessing, hoisted out of the kernel.
    weights = jax.nn.log_softmax(params.astype(jnp.float32), axis=0)   # [N, S]
    S_pad = _round_up(S, 128)                 # lane-dense (unmasked) output stores
    if S_pad != S:
        weights = jnp.pad(weights, ((0, 0), (0, S_pad - S)))
    wm = jnp.max(weights, axis=0, keepdims=True)            # [1, S_pad]
    ew = jnp.exp(weights - wm)                              # [N, S_pad]

    # --- batch tile selection ----------------------------------------------
    tb = _round_up(max(8, min(batch_tile, B)), 8)
    # Keep >= 2 grid steps for big batches so v7x's second TensorCore gets half
    # of the "parallel" batch axis (no-op cost on small batches / 1-TC chips).
    if B >= 512:
        tb = min(tb, _round_up(pl.cdiv(B, 2), 8))

    # VMEM budget: double-buffered prods tile + two output tiles + constants.
    def _vmem_est(t):
        return (2 * (t * N * 4 + 2 * t * S_pad * 4)
                + 2 * (2 * N * S_pad * 4 + S_pad * 4))
    while tb > 8 and _vmem_est(tb) > 40 * 1024 * 1024:
        tb = _round_up(tb // 2, 8)

    B_pad = _round_up(B, tb)
    prods_in = prods if B_pad == B else jnp.pad(prods, ((0, B_pad - B), (0, 0)))

    compiler_kwargs = dict(dimension_semantics=("parallel",))
    if _vmem_est(tb) > 24 * 1024 * 1024:
        compiler_kwargs["vmem_limit_bytes"] = 64 * 1024 * 1024

    grid = (B_pad // tb,)
    sums, idx = pl.pallas_call(
        _sum_vector_kernel,
        out_shape=(
            jax.ShapeDtypeStruct((B_pad, S_pad), prods.dtype),
            jax.ShapeDtypeStruct((B_pad, S_pad), jnp.int32),
        ),
        grid_spec=pltpu.PrefetchScalarGridSpec(
            num_scalar_prefetch=0,
            grid=grid,
            in_specs=[
                pl.BlockSpec((tb, N), lambda i: (i, 0)),        # per-tile prods
                pl.BlockSpec((N, S_pad), lambda i: (0, 0)),     # weights (const block)
                pl.BlockSpec((N, S_pad), lambda i: (0, 0)),     # exp(w - wm) (const)
                pl.BlockSpec((1, S_pad), lambda i: (0, 0)),     # wm (const)
            ],
            out_specs=[
                pl.BlockSpec((tb, S_pad), lambda i: (i, 0)),
                pl.BlockSpec((tb, S_pad), lambda i: (i, 0)),
            ],
        ),
        compiler_params=pltpu.CompilerParams(**compiler_kwargs),
    )(prods_in, weights, ew, wm)

    # Only pay for slice copies when padding actually happened; callers able to
    # consume the lane-padded [B_pad, S_pad] slabs should use them directly.
    if B_pad != B or S_pad != S:
        sums, idx = sums[:B, :S], idx[:B, :S]
    return sums, idx


if __name__ == "__main__":
    key = jax.random.PRNGKey(0)
    k1, k2, k3 = jax.random.split(key, 3)

    B = 64          # batch (divides the tile -> no host-side pad/slice copies)
    sizes = (8, 8)  # two product vectors, 8 nodes each -> N = 16 children
    S = 128         # num_sums (lane-dense output, no S padding)
    N = sum(sizes)

    # product-node log-probabilities (log-space inputs to the sum layer)
    inp0 = -jnp.abs(jax.random.normal(k1, (B, sizes[0]), dtype=jnp.float32))
    inp1 = -jnp.abs(jax.random.normal(k2, (B, sizes[1]), dtype=jnp.float32))
    # sum parameters, as grab_sum_parameters(num_inputs, num_sums) would allocate
    params = jax.random.normal(k3, (N, S), dtype=jnp.float32)

    sums, max_child_idx = sum_vector_forward([inp0, inp1], params)
    jax.block_until_ready((sums, max_child_idx))

    # reference check in plain JAX
    prods = jnp.concatenate([inp0, inp1], axis=1)
    w = jax.nn.log_softmax(params, axis=0)
    cv = prods[:, :, None] + w[None, :, :]
    ref_sums = jax.nn.logsumexp(cv, axis=1)
    ref_idx = jnp.argmax(cv, axis=1).astype(jnp.int32)
    assert jnp.allclose(sums, ref_sums, atol=1e-5, rtol=1e-5)
    assert jnp.array_equal(max_child_idx, ref_idx)

    print("KERNEL_OK")
</pallas_src>

<mosaic_0001>
module attributes {stable_mosaic.version = 11 : i64} {
  func.func @_sum_vector_kernel(%arg0: i32, %arg1: memref<64x16xf32, #tpu.memory_space<vmem>>, %arg2: memref<16x128xf32, #tpu.memory_space<vmem>>, %arg3: memref<16x128xf32, #tpu.memory_space<vmem>>, %arg4: memref<1x128xf32, #tpu.memory_space<vmem>>, %arg5: memref<64x128xf32, #tpu.memory_space<vmem>>, %arg6: memref<64x128xi32, #tpu.memory_space<vmem>>) attributes {dimension_semantics = [#tpu.dimension_semantics<parallel>], iteration_bounds = array<i64: 1>, scalar_prefetch = 0 : i64, scratch_operands = 0 : i64, tpu.core_type = #tpu.core_type<tc>, window_params = [{transform_indices = @transform_0, window_bounds = array<i64: 64, 16>}, {pipeline_mode = #tpu.pipeline_mode<synchronous>, transform_indices = @transform_1, window_bounds = array<i64: 16, 128>}, {pipeline_mode = #tpu.pipeline_mode<synchronous>, transform_indices = @transform_2, window_bounds = array<i64: 16, 128>}, {pipeline_mode = #tpu.pipeline_mode<synchronous>, transform_indices = @transform_3, window_bounds = array<i64: 1, 128>}, {transform_indices = @transform_4, window_bounds = array<i64: 64, 128>}, {transform_indices = @transform_5, window_bounds = array<i64: 64, 128>}]} {
    %c0 = arith.constant 0 : index
    %c0_0 = arith.constant 0 : index
    %0 = vector.load %arg1[%c0, %c0_0] : memref<64x16xf32, #tpu.memory_space<vmem>>, vector<64x16xf32>
    %c0_1 = arith.constant 0 : index
    %c0_2 = arith.constant 0 : index
    %1 = vector.load %arg2[%c0_1, %c0_2] : memref<16x128xf32, #tpu.memory_space<vmem>>, vector<16x128xf32>
    %cst = arith.constant dense<0xFF800000> : vector<64xf32>
    %2 = vector.multi_reduction <maximumf>, %0, %cst [1] : vector<64x16xf32> to vector<64xf32>
    %3 = vector.shape_cast %2 : vector<64xf32> to vector<64x1xf32>
    %4 = vector.broadcast %3 : vector<64x1xf32> to vector<64x16xf32>
    %5 = arith.subf %0, %4 : vector<64x16xf32>
    %6 = math.exp %5 : vector<64x16xf32>
    %c0_3 = arith.constant 0 : index
    %c0_4 = arith.constant 0 : index
    %7 = vector.load %arg3[%c0_3, %c0_4] : memref<16x128xf32, #tpu.memory_space<vmem>>, vector<16x128xf32>
    %cst_5 = arith.constant dense<0.000000e+00> : vector<64x128xf32>
    %8 = tpu.matmul %6, %7, %cst_5 {dimension_numbers = #tpu.dot_dimension_numbers<[1], [0], [0], [1], [0, 0, 1, 1], [], []>, precision = #tpu.contract_precision<fp32>} : vector<64x16xf32>, vector<16x128xf32>, vector<64x128xf32> -> vector<64x128xf32>
    %c0_6 = arith.constant 0 : index
    %c0_7 = arith.constant 0 : index
    %9 = vector.load %arg4[%c0_6, %c0_7] : memref<1x128xf32, #tpu.memory_space<vmem>>, vector<1x128xf32>
    %10 = vector.broadcast %3 : vector<64x1xf32> to vector<64x128xf32>
    %11 = vector.broadcast %9 : vector<1x128xf32> to vector<64x128xf32>
    %12 = arith.addf %10, %11 : vector<64x128xf32>
    %13 = math.log %8 : vector<64x128xf32>
    %14 = arith.addf %12, %13 : vector<64x128xf32>
    %c0_8 = arith.constant 0 : index
    %c0_9 = arith.constant 0 : index
    %15 = vector.load %arg5[%c0_8, %c0_9] : memref<64x128xf32, #tpu.memory_space<vmem>>, vector<64x128xf32>
    tpu.vector_store %arg5[%c0_8, %c0_9], %14 {strides = array<i32>} : memref<64x128xf32, #tpu.memory_space<vmem>>, vector<64x128xf32>,
    %16 = vector.extract_strided_slice %0 {offsets = [0, 0], sizes = [64, 1], strides = [1, 1]} : vector<64x16xf32> to vector<64x1xf32>
    %17 = vector.extract_strided_slice %1 {offsets = [0, 0], sizes = [1, 128], strides = [1, 1]} : vector<16x128xf32> to vector<1x128xf32>
    %18 = vector.broadcast %16 : vector<64x1xf32> to vector<64x128xf32>
    %19 = vector.broadcast %17 : vector<1x128xf32> to vector<64x128xf32>
    %20 = arith.addf %18, %19 : vector<64x128xf32>
    %c0_i32 = arith.constant 0 : i32
    %21 = vector.broadcast %c0_i32 : i32 to vector<64x128xi32>
    %22 = vector.extract_strided_slice %0 {offsets = [0, 1], sizes = [64, 1], strides = [1, 1]} : vector<64x16xf32> to vector<64x1xf32>
    %23 = vector.extract_strided_slice %1 {offsets = [1, 0], sizes = [1, 128], strides = [1, 1]} : vector<16x128xf32> to vector<1x128xf32>
    %24 = vector.broadcast %22 : vector<64x1xf32> to vector<64x128xf32>
    %25 = vector.broadcast %23 : vector<1x128xf32> to vector<64x128xf32>
    %26 = arith.addf %24, %25 : vector<64x128xf32>
    %27 = arith.cmpf ogt, %26, %20 : vector<64x128xf32>
    %28 = arith.select %27, %26, %20 : vector<64x128xi1>, vector<64x128xf32>
    %c1_i32 = arith.constant 1 : i32
    %29 = vector.broadcast %c1_i32 : i32 to vector<64x128xi32>
    %30 = arith.select %27, %29, %21 : vector<64x128xi1>, vector<64x128xi32>
    %31 = vector.extract_strided_slice %0 {offsets = [0, 2], sizes = [64, 1], strides = [1, 1]} : vector<64x16xf32> to vector<64x1xf32>
    %32 = vector.extract_strided_slice %1 {offsets = [2, 0], sizes = [1, 128], strides = [1, 1]} : vector<16x128xf32> to vector<1x128xf32>
    %33 = vector.broadcast %31 : vector<64x1xf32> to vector<64x128xf32>
    %34 = vector.broadcast %32 : vector<1x128xf32> to vector<64x128xf32>
    %35 = arith.addf %33, %34 : vector<64x128xf32>
    %36 = arith.cmpf ogt, %35, %28 : vector<64x128xf32>
    %37 = arith.select %36, %35, %28 : vector<64x128xi1>, vector<64x128xf32>
    %c2_i32 = arith.constant 2 : i32
    %38 = vector.broadcast %c2_i32 : i32 to vector<64x128xi32>
    %39 = arith.select %36, %38, %30 : vector<64x128xi1>, vector<64x128xi32>
    %40 = vector.extract_strided_slice %0 {offsets = [0, 3], sizes = [64, 1], strides = [1, 1]} : vector<64x16xf32> to vector<64x1xf32>
    %41 = vector.extract_strided_slice %1 {offsets = [3, 0], sizes = [1, 128], strides = [1, 1]} : vector<16x128xf32> to vector<1x128xf32>
    %42 = vector.broadcast %40 : vector<64x1xf32> to vector<64x128xf32>
    %43 = vector.broadcast %41 : vector<1x128xf32> to vector<64x128xf32>
    %44 = arith.addf %42, %43 : vector<64x128xf32>
    %45 = arith.cmpf ogt, %44, %37 : vector<64x128xf32>
    %46 = arith.select %45, %44, %37 : vector<64x128xi1>, vector<64x128xf32>
    %c3_i32 = arith.constant 3 : i32
    %47 = vector.broadcast %c3_i32 : i32 to vector<64x128xi32>
    %48 = arith.select %45, %47, %39 : vector<64x128xi1>, vector<64x128xi32>
    %49 = vector.extract_strided_slice %0 {offsets = [0, 4], sizes = [64, 1], strides = [1, 1]} : vector<64x16xf32> to vector<64x1xf32>
    %50 = vector.extract_strided_slice %1 {offsets = [4, 0], sizes = [1, 128], strides = [1, 1]} : vector<16x128xf32> to vector<1x128xf32>
    %51 = vector.broadcast %49 : vector<64x1xf32> to vector<64x128xf32>
    %52 = vector.broadcast %50 : vector<1x128xf32> to vector<64x128xf32>
    %53 = arith.addf %51, %52 : vector<64x128xf32>
    %54 = arith.cmpf ogt, %53, %46 : vector<64x128xf32>
    %55 = arith.select %54, %53, %46 : vector<64x128xi1>, vector<64x128xf32>
    %c4_i32 = arith.constant 4 : i32
    %56 = vector.broadcast %c4_i32 : i32 to vector<64x128xi32>
    %57 = arith.select %54, %56, %48 : vector<64x128xi1>, vector<64x128xi32>
    %58 = vector.extract_strided_slice %0 {offsets = [0, 5], sizes = [64, 1], strides = [1, 1]} : vector<64x16xf32> to vector<64x1xf32>
    %59 = vector.extract_strided_slice %1 {offsets = [5, 0], sizes = [1, 128], strides = [1, 1]} : vector<16x128xf32> to vector<1x128xf32>
    %60 = vector.broadcast %58 : vector<64x1xf32> to vector<64x128xf32>
    %61 = vector.broadcast %59 : vector<1x128xf32> to vector<64x128xf32>
    %62 = arith.addf %60, %61 : vector<64x128xf32>
    %63 = arith.cmpf ogt, %62, %55 : vector<64x128xf32>
    %64 = arith.select %63, %62, %55 : vector<64x128xi1>, vector<64x128xf32>
    %c5_i32 = arith.constant 5 : i32
    %65 = vector.broadcast %c5_i32 : i32 to vector<64x128xi32>
    %66 = arith.select %63, %65, %57 : vector<64x128xi1>, vector<64x128xi32>
    %67 = vector.extract_strided_slice %0 {offsets = [0, 6], sizes = [64, 1], strides = [1, 1]} : vector<64x16xf32> to vector<64x1xf32>
    %68 = vector.extract_strided_slice %1 {offsets = [6, 0], sizes = [1, 128], strides = [1, 1]} : vector<16x128xf32> to vector<1x128xf32>
    %69 = vector.broadcast %67 : vector<64x1xf32> to vector<64x128xf32>
    %70 = vector.broadcast %68 : vector<1x128xf32> to vector<64x128xf32>
    %71 = arith.addf %69, %70 : vector<64x128xf32>
    %72 = arith.cmpf ogt, %71, %64 : vector<64x128xf32>
    %73 = arith.select %72, %71, %64 : vector<64x128xi1>, vector<64x128xf32>
    %c6_i32 = arith.constant 6 : i32
    %74 = vector.broadcast %c6_i32 : i32 to vector<64x128xi32>
    %75 = arith.select %72, %74, %66 : vector<64x128xi1>, vector<64x128xi32>
    %76 = vector.extract_strided_slice %0 {offsets = [0, 7], sizes = [64, 1], strides = [1, 1]} : vector<64x16xf32> to vector<64x1xf32>
    %77 = vector.extract_strided_slice %1 {offsets = [7, 0], sizes = [1, 128], strides = [1, 1]} : vector<16x128xf32> to vector<1x128xf32>
    %78 = vector.broadcast %76 : vector<64x1xf32> to vector<64x128xf32>
    %79 = vector.broadcast %77 : vector<1x128xf32> to vector<64x128xf32>
    %80 = arith.addf %78, %79 : vector<64x128xf32>
    %81 = arith.cmpf ogt, %80, %73 : vector<64x128xf32>
    %82 = arith.select %81, %80, %73 : vector<64x128xi1>, vector<64x128xf32>
    %c7_i32 = arith.constant 7 : i32
    %83 = vector.broadcast %c7_i32 : i32 to vector<64x128xi32>
    %84 = arith.select %81, %83, %75 : vector<64x128xi1>, vector<64x128xi32>
    %85 = vector.extract_strided_slice %0 {offsets = [0, 8], sizes = [64, 1], strides = [1, 1]} : vector<64x16xf32> to vector<64x1xf32>
    %86 = vector.extract_strided_slice %1 {offsets = [8, 0], sizes = [1, 128], strides = [1, 1]} : vector<16x128xf32> to vector<1x128xf32>
    %87 = vector.broadcast %85 : vector<64x1xf32> to vector<64x128xf32>
    %88 = vector.broadcast %86 : vector<1x128xf32> to vector<64x128xf32>
    %89 = arith.addf %87, %88 : vector<64x128xf32>
    %90 = arith.cmpf ogt, %89, %82 : vector<64x128xf32>
    %91 = arith.select %90, %89, %82 : vector<64x128xi1>, vector<64x128xf32>
    %c8_i32 = arith.constant 8 : i32
    %92 = vector.broadcast %c8_i32 : i32 to vector<64x128xi32>
    %93 = arith.select %90, %92, %84 : vector<64x128xi1>, vector<64x128xi32>
    %94 = vector.extract_strided_slice %0 {offsets = [0, 9], sizes = [64, 1], strides = [1, 1]} : vector<64x16xf32> to vector<64x1xf32>
    %95 = vector.extract_strided_slice %1 {offsets = [9, 0], sizes = [1, 128], strides = [1, 1]} : vector<16x128xf32> to vector<1x128xf32>
    %96 = vector.broadcast %94 : vector<64x1xf32> to vector<64x128xf32>
    %97 = vector.broadcast %95 : vector<1x128xf32> to vector<64x128xf32>
    %98 = arith.addf %96, %97 : vector<64x128xf32>
    %99 = arith.cmpf ogt, %98, %91 : vector<64x128xf32>
    %100 = arith.select %99, %98, %91 : vector<64x128xi1>, vector<64x128xf32>
    %c9_i32 = arith.constant 9 : i32
    %101 = vector.broadcast %c9_i32 : i32 to vector<64x128xi32>
    %102 = arith.select %99, %101, %93 : vector<64x128xi1>, vector<64x128xi32>
    %103 = vector.extract_strided_slice %0 {offsets = [0, 10], sizes = [64, 1], strides = [1, 1]} : vector<64x16xf32> to vector<64x1xf32>
    %104 = vector.extract_strided_slice %1 {offsets = [10, 0], sizes = [1, 128], strides = [1, 1]} : vector<16x128xf32> to vector<1x128xf32>
    %105 = vector.broadcast %103 : vector<64x1xf32> to vector<64x128xf32>
    %106 = vector.broadcast %104 : vector<1x128xf32> to vector<64x128xf32>
    %107 = arith.addf %105, %106 : vector<64x128xf32>
    %108 = arith.cmpf ogt, %107, %100 : vector<64x128xf32>
    %109 = arith.select %108, %107, %100 : vector<64x128xi1>, vector<64x128xf32>
    %c10_i32 = arith.constant 10 : i32
    %110 = vector.broadcast %c10_i32 : i32 to vector<64x128xi32>
    %111 = arith.select %108, %110, %102 : vector<64x128xi1>, vector<64x128xi32>
    %112 = vector.extract_strided_slice %0 {offsets = [0, 11], sizes = [64, 1], strides = [1, 1]} : vector<64x16xf32> to vector<64x1xf32>
    %113 = vector.extract_strided_slice %1 {offsets = [11, 0], sizes = [1, 128], strides = [1, 1]} : vector<16x128xf32> to vector<1x128xf32>
    %114 = vector.broadcast %112 : vector<64x1xf32> to vector<64x128xf32>
    %115 = vector.broadcast %113 : vector<1x128xf32> to vector<64x128xf32>
    %116 = arith.addf %114, %115 : vector<64x128xf32>
    %117 = arith.cmpf ogt, %116, %109 : vector<64x128xf32>
    %118 = arith.select %117, %116, %109 : vector<64x128xi1>, vector<64x128xf32>
    %c11_i32 = arith.constant 11 : i32
    %119 = vector.broadcast %c11_i32 : i32 to vector<64x128xi32>
    %120 = arith.select %117, %119, %111 : vector<64x128xi1>, vector<64x128xi32>
    %121 = vector.extract_strided_slice %0 {offsets = [0, 12], sizes = [64, 1], strides = [1, 1]} : vector<64x16xf32> to vector<64x1xf32>
    %122 = vector.extract_strided_slice %1 {offsets = [12, 0], sizes = [1, 128], strides = [1, 1]} : vector<16x128xf32> to vector<1x128xf32>
    %123 = vector.broadcast %121 : vector<64x1xf32> to vector<64x128xf32>
    %124 = vector.broadcast %122 : vector<1x128xf32> to vector<64x128xf32>
    %125 = arith.addf %123, %124 : vector<64x128xf32>
    %126 = arith.cmpf ogt, %125, %118 : vector<64x128xf32>
    %127 = arith.select %126, %125, %118 : vector<64x128xi1>, vector<64x128xf32>
    %c12_i32 = arith.constant 12 : i32
    %128 = vector.broadcast %c12_i32 : i32 to vector<64x128xi32>
    %129 = arith.select %126, %128, %120 : vector<64x128xi1>, vector<64x128xi32>
    %130 = vector.extract_strided_slice %0 {offsets = [0, 13], sizes = [64, 1], strides = [1, 1]} : vector<64x16xf32> to vector<64x1xf32>
    %131 = vector.extract_strided_slice %1 {offsets = [13, 0], sizes = [1, 128], strides = [1, 1]} : vector<16x128xf32> to vector<1x128xf32>
    %132 = vector.broadcast %130 : vector<64x1xf32> to vector<64x128xf32>
    %133 = vector.broadcast %131 : vector<1x128xf32> to vector<64x128xf32>
    %134 = arith.addf %132, %133 : vector<64x128xf32>
    %135 = arith.cmpf ogt, %134, %127 : vector<64x128xf32>
    %136 = arith.select %135, %134, %127 : vector<64x128xi1>, vector<64x128xf32>
    %c13_i32 = arith.constant 13 : i32
    %137 = vector.broadcast %c13_i32 : i32 to vector<64x128xi32>
    %138 = arith.select %135, %137, %129 : vector<64x128xi1>, vector<64x128xi32>
    %139 = vector.extract_strided_slice %0 {offsets = [0, 14], sizes = [64, 1], strides = [1, 1]} : vector<64x16xf32> to vector<64x1xf32>
    %140 = vector.extract_strided_slice %1 {offsets = [14, 0], sizes = [1, 128], strides = [1, 1]} : vector<16x128xf32> to vector<1x128xf32>
    %141 = vector.broadcast %139 : vector<64x1xf32> to vector<64x128xf32>
    %142 = vector.broadcast %140 : vector<1x128xf32> to vector<64x128xf32>
    %143 = arith.addf %141, %142 : vector<64x128xf32>
    %144 = arith.cmpf ogt, %143, %136 : vector<64x128xf32>
    %145 = arith.select %144, %143, %136 : vector<64x128xi1>, vector<64x128xf32>
    %c14_i32 = arith.constant 14 : i32
    %146 = vector.broadcast %c14_i32 : i32 to vector<64x128xi32>
    %147 = arith.select %144, %146, %138 : vector<64x128xi1>, vector<64x128xi32>
    %148 = vector.extract_strided_slice %0 {offsets = [0, 15], sizes = [64, 1], strides = [1, 1]} : vector<64x16xf32> to vector<64x1xf32>
    %149 = vector.extract_strided_slice %1 {offsets = [15, 0], sizes = [1, 128], strides = [1, 1]} : vector<16x128xf32> to vector<1x128xf32>
    %150 = vector.broadcast %148 : vector<64x1xf32> to vector<64x128xf32>
    %151 = vector.broadcast %149 : vector<1x128xf32> to vector<64x128xf32>
    %152 = arith.addf %150, %151 : vector<64x128xf32>
    %153 = arith.cmpf ogt, %152, %145 : vector<64x128xf32>
    %c15_i32 = arith.constant 15 : i32
    %154 = vector.broadcast %c15_i32 : i32 to vector<64x128xi32>
    %155 = arith.select %153, %154, %147 : vector<64x128xi1>, vector<64x128xi32>
    %c0_10 = arith.constant 0 : index
    %c0_11 = arith.constant 0 : index
    %156 = vector.load %arg6[%c0_10, %c0_11] : memref<64x128xi32, #tpu.memory_space<vmem>>, vector<64x128xi32>
    tpu.vector_store %arg6[%c0_10, %c0_11], %155 {strides = array<i32>} : memref<64x128xi32, #tpu.memory_space<vmem>>, vector<64x128xi32>,
    return
  }
  func.func @transform_0(%arg0: i32) -> (i32, i32) {
    %c0_i32 = arith.constant 0 : i32
    %c0_i32_0 = arith.constant 0 : i32
    return %arg0, %c0_i32 : i32, i32
  }
  func.func @transform_1(%arg0: i32) -> (i32, i32) {
    %c0_i32 = arith.constant 0 : i32
    %c0_i32_0 = arith.constant 0 : i32
    %c0_i32_1 = arith.constant 0 : i32
    return %c0_i32, %c0_i32_0 : i32, i32
  }
  func.func @transform_2(%arg0: i32) -> (i32, i32) {
    %c0_i32 = arith.constant 0 : i32
    %c0_i32_0 = arith.constant 0 : i32
    %c0_i32_1 = arith.constant 0 : i32
    return %c0_i32, %c0_i32_0 : i32, i32
  }
  func.func @transform_3(%arg0: i32) -> (i32, i32) {
    %c0_i32 = arith.constant 0 : i32
    %c0_i32_0 = arith.constant 0 : i32
    %c0_i32_1 = arith.constant 0 : i32
    return %c0_i32, %c0_i32_0 : i32, i32
  }
  func.func @transform_4(%arg0: i32) -> (i32, i32) {
    %c0_i32 = arith.constant 0 : i32
    %c0_i32_0 = arith.constant 0 : i32
    return %arg0, %c0_i32 : i32, i32
  }
  func.func @transform_5(%arg0: i32) -> (i32, i32) {
    %c0_i32 = arith.constant 0 : i32
    %c0_i32_0 = arith.constant 0 : i32
    return %arg0, %c0_i32 : i32, i32
  }
}

</mosaic_0001>

<llo_original>
// kernel: tpu_custom_call.1
$region0: #{tpu_custom_call.1}
  #allocation0 [shape = 'u32[]', space=smem, size = 0x4, offset = 0x4, fixed_abs, tag = 'smem constant byte address 0x4 - core index']
  #allocation1 [shape = 'u32[72,128]{1,0:T(1,128)}', space=vmem, size = 0x9000, scoped, tag = 'internal scratch']
  %s0 = inlined_call_operand.vmem [shape: f32[64,16], index: 0, kind: input, shape index: {}]
  %s1 = inlined_call_operand.vmem [shape: f32[16,128], index: 1, kind: input, shape index: {}]
  %s2 = inlined_call_operand.vmem [shape: f32[16,128], index: 2, kind: input, shape index: {}]
  %s3 = inlined_call_operand.vmem [shape: f32[1,128], index: 3, kind: input, shape index: {}]
  %s4 = inlined_call_operand.hbm [shape: f32[64,128], index: 4, kind: output, shape index: {0}]
  %s5 = inlined_call_operand.hbm [shape: s32[64,128], index: 5, kind: output, shape index: {1}]
  %6 = xla_tuple %s4, %s5
  %s7 = sld [smem:[#allocation0]]
  $region34: #{tpu_custom_call.1} parent=0
    _
  %s9 = ssub.s32 1, %s7
  %s10 = scalar_select 0, %s9, %s7
  $region1: #{tpu_custom_call.1} parent=0
    #allocation2 [shape = 'u8[32768]{0}', space=vmem, size = 0x8000, scoped, tag = 'output window, operand 0, single buffered']
    #allocation3 [shape = 's32[1]{0}', space=sflag, size = 0x4, scoped, tag = 'scoped memory for tpu_custom_call.1']
    #allocation4 [shape = 'u8[32768]{0}', space=vmem, size = 0x8000, scoped, tag = 'output window, operand 1, single buffered']
    #allocation5 [shape = 's32[1]{0}', space=sflag, size = 0x4, scoped, tag = 'scoped memory for tpu_custom_call.1']
    %11 = vsyncpa [#allocation3], 0
    %12 = vsyncpa [#allocation5], 0
    // Predicated region
    $region2: #{tpu_custom_call.1} parent=1 // pred_check
      _
    $region3: #{tpu_custom_call.1} parent=1 // pred_check_branch
      %14 = sbr.rel (0) target = $region5
    $region4: #{tpu_custom_call.1} parent=1 // pred_region
      _
    $region5: #{tpu_custom_call.1} parent=1 // pred_fallthru
      _
    // Predicated region
    $region6: #{tpu_custom_call.1} parent=1 // pred_check
      _
    $region7: #{tpu_custom_call.1} parent=1 // pred_check_branch
      %16 = sbr.rel (0) target = $region9
    $region8: #{tpu_custom_call.1} parent=1 // pred_region
      _
    $region9: #{tpu_custom_call.1} parent=1 // pred_fallthru
      _
    // Predicated region
    $region10: #{tpu_custom_call.1} parent=1 // pred_check
      _
    $region11: #{tpu_custom_call.1} parent=1 // pred_check_branch
      %18 = sbr.rel (0) target = $region13
    $region12: #{tpu_custom_call.1} parent=1 // pred_region
      _
    $region13: #{tpu_custom_call.1} parent=1 // pred_fallthru
      _
    // Predicated region
    $region14: #{tpu_custom_call.1} parent=1 // pred_check
      _
    $region15: #{tpu_custom_call.1} parent=1 // pred_check_branch
      %20 = sbr.rel (0) target = $region17
    $region16: #{tpu_custom_call.1} parent=1 // pred_region
      _
    $region17: #{tpu_custom_call.1} parent=1 // pred_fallthru
      _
    %v21 = vld [vmem:[%s0] sm:$0xff]
    %v22 = vld [vmem:[%s0 + $0x8] sm:$0xff]
    %v23 = vld [vmem:[%s0 + $0x10] sm:$0xff]
    %v24 = vld [vmem:[%s0 + $0x18] sm:$0xff]
    %v25 = vld [vmem:[%s0 + $0x20] sm:$0xff]
    %v26 = vld [vmem:[%s0 + $0x28] sm:$0xff]
    %v27 = vld [vmem:[%s0 + $0x30] sm:$0xff]
    %v28 = vld [vmem:[%s0 + $0x38] sm:$0xff]
    %v29 = vld [vmem:[%s1] sm:$0xff]
    %v30 = vld [vmem:[%s1 + $0x8] sm:$0xff]
    %vm31 = vcmask 130048
    %v32 = vsel %vm31, %v21, -inf
    %33 = vmax.xlane.f32.xlu0 %v32
    %v34 = vpop.xlane.xlu0 %33
    %v35 = vsel %vm31, %v22, -inf
    %36 = vmax.xlane.f32.xlu0 %v35
    %v37 = vpop.xlane.xlu0 %36
    %v38 = vsel %vm31, %v23, -inf
    %39 = vmax.xlane.f32.xlu0 %v38
    %v40 = vpop.xlane.xlu0 %39
    %v41 = vsel %vm31, %v24, -inf
    %42 = vmax.xlane.f32.xlu0 %v41
    %v43 = vpop.xlane.xlu0 %42
    %v44 = vsel %vm31, %v25, -inf
    %45 = vmax.xlane.f32.xlu0 %v44
    %v46 = vpop.xlane.xlu0 %45
    %v47 = vsel %vm31, %v26, -inf
    %48 = vmax.xlane.f32.xlu0 %v47
    %v49 = vpop.xlane.xlu0 %48
    %v50 = vsel %vm31, %v27, -inf
    %51 = vmax.xlane.f32.xlu0 %v50
    %v52 = vpop.xlane.xlu0 %51
    %v53 = vsel %vm31, %v28, -inf
    %54 = vmax.xlane.f32.xlu0 %v53
    %v55 = vpop.xlane.xlu0 %54
    %v56 = vsub.f32 %v21, %v34
    %v57 = vsub.f32 %v22, %v37
    %v58 = vsub.f32 %v23, %v40
    %v59 = vsub.f32 %v24, %v43
    %v60 = vsub.f32 %v25, %v46
    %v61 = vsub.f32 %v26, %v49
    %v62 = vsub.f32 %v27, %v52
    %v63 = vsub.f32 %v28, %v55
    %v64 = vmul.f32 %v56, 1.442695
    %v65 = vpow.pop %v64
    %v66 = vmul.f32 %v57, 1.442695
    %v67 = vpow.pop %v66
    %v68 = vmul.f32 %v58, 1.442695
    %v69 = vpow.pop %v68
    %v70 = vmul.f32 %v59, 1.442695
    %v71 = vpow.pop %v70
    %v72 = vmul.f32 %v60, 1.442695
    %v73 = vpow.pop %v72
    %v74 = vmul.f32 %v61, 1.442695
    %v75 = vpow.pop %v74
    %v76 = vmul.f32 %v62, 1.442695
    %v77 = vpow.pop %v76
    %v78 = vmul.f32 %v63, 1.442695
    %v79 = vpow.pop %v78
    %v80 = vld [vmem:[%s2] sm:$0xff]
    %v81 = vld [vmem:[%s2 + $0x8] sm:$0xff]
    %v83 = vsel %vm31, %v65, 0
    %v86 = vsel %vm31, %v67, 0
    %v89 = vsel %vm31, %v69, 0
    %v92 = vsel %vm31, %v71, 0
    %v95 = vsel %vm31, %v73, 0
    %v98 = vsel %vm31, %v75, 0
    %v101 = vsel %vm31, %v77, 0
    %v104 = vsel %vm31, %v79, 0
    %106 = vmatpush.msra.mxu0 0.0
    %107 = vmatpush.msra.mxu0 0.0
    %108 = vmatpush.msra.mxu0 0.0
    %109 = vmatpush.msra.mxu0 0.0
    %110 = vmatpush.msra.mxu0 0.0
    %111 = vmatpush.msra.mxu0 0.0
    %112 = vmatpush.msra.mxu0 0.0
    %113 = vmatpush.msra.mxu0 0.0
    %114 = vmatpush.msra.mxu0 0.0
    %115 = vmatpush.msra.mxu0 0.0
    %116 = vmatpush.msra.mxu0 0.0
    %117 = vmatpush.msra.mxu0 0.0
    %118 = vmatpush.msra.mxu0 0.0
    %119 = vmatpush.msra.mxu0 0.0
    %v120 = vand.u32 %v81, 4294901760
    %121 = vmatpush.msra.mxu0 %v120
    %v122 = vand.u32 %v80, 4294901760
    %123 = vmatpush.msra.mxu0 %v122
    %v124 = vand.u32 %v83, 4294901760
    %v125 = vsub.f32 %v83, %v124
    %v126 = vand.u32 %v125, 4294901760
    %v127 = vsub.f32 %v125, %v126
    %v128 = vand.u32 %v127, 4294901760
    %129 = vmatmul.f32.gmra.mxu0 %v128
    %v130 = vpop.f32.mrf.mxu0
    %v131 = vadd.f32 0.0, %v130
    %v132 = vand.u32 %v86, 4294901760
    %v133 = vsub.f32 %v86, %v132
    %v134 = vand.u32 %v133, 4294901760
    %v135 = vsub.f32 %v133, %v134
    %v136 = vand.u32 %v135, 4294901760
    %137 = vmatmul.f32.gmra.mxu0 %v136
    %v138 = vpop.f32.mrf.mxu0
    %v139 = vadd.f32 0.0, %v138
    %v140 = vand.u32 %v89, 4294901760
    %v141 = vsub.f32 %v89, %v140
    %v142 = vand.u32 %v141, 4294901760
    %v143 = vsub.f32 %v141, %v142
    %v144 = vand.u32 %v143, 4294901760
    %145 = vmatmul.f32.gmra.mxu0 %v144
    %v146 = vpop.f32.mrf.mxu0
    %v147 = vadd.f32 0.0, %v146
    %v148 = vand.u32 %v92, 4294901760
    %v149 = vsub.f32 %v92, %v148
    %v150 = vand.u32 %v149, 4294901760
    %v151 = vsub.f32 %v149, %v150
    %v152 = vand.u32 %v151, 4294901760
    %153 = vmatmul.f32.gmra.mxu0 %v152
    %v154 = vpop.f32.mrf.mxu0
    %v155 = vadd.f32 0.0, %v154
    %v156 = vand.u32 %v95, 4294901760
    %v157 = vsub.f32 %v95, %v156
    %v158 = vand.u32 %v157, 4294901760
    %v159 = vsub.f32 %v157, %v158
    %v160 = vand.u32 %v159, 4294901760
    %161 = vmatmul.f32.gmra.mxu0 %v160
    %v162 = vpop.f32.mrf.mxu0
    %v163 = vadd.f32 0.0, %v162
    %v164 = vand.u32 %v98, 4294901760
    %v165 = vsub.f32 %v98, %v164
    %v166 = vand.u32 %v165, 4294901760
    %v167 = vsub.f32 %v165, %v166
    %v168 = vand.u32 %v167, 4294901760
    %169 = vmatmul.f32.gmra.mxu0 %v168
    %v170 = vpop.f32.mrf.mxu0
    %v171 = vadd.f32 0.0, %v170
    %v172 = vand.u32 %v101, 4294901760
    %v173 = vsub.f32 %v101, %v172
    %v174 = vand.u32 %v173, 4294901760
    %v175 = vsub.f32 %v173, %v174
    %v176 = vand.u32 %v175, 4294901760
    %177 = vmatmul.f32.gmra.mxu0 %v176
    %v178 = vpop.f32.mrf.mxu0
    %v179 = vadd.f32 0.0, %v178
    %v180 = vand.u32 %v104, 4294901760
    %v181 = vsub.f32 %v104, %v180
    %v182 = vand.u32 %v181, 4294901760
    %v183 = vsub.f32 %v181, %v182
    %v184 = vand.u32 %v183, 4294901760
    %185 = vmatmul.f32.gmra.mxu0 %v184
    %v186 = vpop.f32.mrf.mxu0
    %v187 = vadd.f32 0.0, %v186
    %188 = vdwg.mxu0
    %189 = vmatpush.msra.mxu0 0.0
    %190 = vmatpush.msra.mxu0 0.0
    %191 = vmatpush.msra.mxu0 0.0
    %192 = vmatpush.msra.mxu0 0.0
    %193 = vmatpush.msra.mxu0 0.0
    %194 = vmatpush.msra.mxu0 0.0
    %195 = vmatpush.msra.mxu0 0.0
    %196 = vmatpush.msra.mxu0 0.0
    %197 = vmatpush.msra.mxu0 0.0
    %198 = vmatpush.msra.mxu0 0.0
    %199 = vmatpush.msra.mxu0 0.0
    %200 = vmatpush.msra.mxu0 0.0
    %201 = vmatpush.msra.mxu0 0.0
    %202 = vmatpush.msra.mxu0 0.0
    %v203 = vand.u32 %v81, 4294901760
    %v204 = vsub.f32 %v81, %v203
    %v205 = vand.u32 %v204, 4294901760
    %v206 = vsub.f32 %v204, %v205
    %v207 = vand.u32 %v206, 4294901760
    %208 = vmatpush.msra.mxu0 %v207
    %v209 = vand.u32 %v80, 4294901760
    %v210 = vsub.f32 %v80, %v209
    %v211 = vand.u32 %v210, 4294901760
    %v212 = vsub.f32 %v210, %v211
    %v213 = vand.u32 %v212, 4294901760
    %214 = vmatpush.msra.mxu0 %v213
    %v215 = vand.u32 %v83, 4294901760
    %216 = vmatmul.f32.gmra.mxu0 %v215
    %v217 = vpop.f32.mrf.mxu0
    %v218 = vadd.f32 %v131, %v217
    %v219 = vand.u32 %v86, 4294901760
    %220 = vmatmul.f32.gmra.mxu0 %v219
    %v221 = vpop.f32.mrf.mxu0
    %v222 = vadd.f32 %v139, %v221
    %v223 = vand.u32 %v89, 4294901760
    %224 = vmatmul.f32.gmra.mxu0 %v223
    %v225 = vpop.f32.mrf.mxu0
    %v226 = vadd.f32 %v147, %v225
    %v227 = vand.u32 %v92, 4294901760
    %228 = vmatmul.f32.gmra.mxu0 %v227
    %v229 = vpop.f32.mrf.mxu0
    %v230 = vadd.f32 %v155, %v229
    %v231 = vand.u32 %v95, 4294901760
    %232 = vmatmul.f32.gmra.mxu0 %v231
    %v233 = vpop.f32.mrf.mxu0
    %v234 = vadd.f32 %v163, %v233
    %v235 = vand.u32 %v98, 4294901760
    %236 = vmatmul.f32.gmra.mxu0 %v235
    %v237 = vpop.f32.mrf.mxu0
    %v238 = vadd.f32 %v171, %v237
    %v239 = vand.u32 %v101, 4294901760
    %240 = vmatmul.f32.gmra.mxu0 %v239
    %v241 = vpop.f32.mrf.mxu0
    %v242 = vadd.f32 %v179, %v241
    %v243 = vand.u32 %v104, 4294901760
    %244 = vmatmul.f32.gmra.mxu0 %v243
    %v245 = vpop.f32.mrf.mxu0
    %v246 = vadd.f32 %v187, %v245
    %247 = vdwg.mxu0
    %248 = vmatpush.msra.mxu0 0.0
    %249 = vmatpush.msra.mxu0 0.0
    %250 = vmatpush.msra.mxu0 0.0
    %251 = vmatpush.msra.mxu0 0.0
    %252 = vmatpush.msra.mxu0 0.0
    %253 = vmatpush.msra.mxu0 0.0
    %254 = vmatpush.msra.mxu0 0.0
    %255 = vmatpush.msra.mxu0 0.0
    %256 = vmatpush.msra.mxu0 0.0
    %257 = vmatpush.msra.mxu0 0.0
    %258 = vmatpush.msra.mxu0 0.0
    %259 = vmatpush.msra.mxu0 0.0
    %260 = vmatpush.msra.mxu0 0.0
    %261 = vmatpush.msra.mxu0 0.0
    %v262 = vand.u32 %v81, 4294901760
    %v263 = vsub.f32 %v81, %v262
    %264 = vmatpush.msra.mxu0 %v263
    %v265 = vand.u32 %v80, 4294901760
    %v266 = vsub.f32 %v80, %v265
    %267 = vmatpush.msra.mxu0 %v266
    %v268 = vand.u32 %v83, 4294901760
    %v269 = vsub.f32 %v83, %v268
    %270 = vmatmul.f32.gmra.mxu0 %v269
    %v271 = vpop.f32.mrf.mxu0
    %v272 = vadd.f32 %v218, %v271
    %v273 = vand.u32 %v86, 4294901760
    %v274 = vsub.f32 %v86, %v273
    %275 = vmatmul.f32.gmra.mxu0 %v274
    %v276 = vpop.f32.mrf.mxu0
    %v277 = vadd.f32 %v222, %v276
    %v278 = vand.u32 %v89, 4294901760
    %v279 = vsub.f32 %v89, %v278
    %280 = vmatmul.f32.gmra.mxu0 %v279
    %v281 = vpop.f32.mrf.mxu0
    %v282 = vadd.f32 %v226, %v281
    %v283 = vand.u32 %v92, 4294901760
    %v284 = vsub.f32 %v92, %v283
    %285 = vmatmul.f32.gmra.mxu0 %v284
    %v286 = vpop.f32.mrf.mxu0
    %v287 = vadd.f32 %v230, %v286
    %v288 = vand.u32 %v95, 4294901760
    %v289 = vsub.f32 %v95, %v288
    %290 = vmatmul.f32.gmra.mxu0 %v289
    %v291 = vpop.f32.mrf.mxu0
    %v292 = vadd.f32 %v234, %v291
    %v293 = vand.u32 %v98, 4294901760
    %v294 = vsub.f32 %v98, %v293
    %295 = vmatmul.f32.gmra.mxu0 %v294
    %v296 = vpop.f32.mrf.mxu0
    %v297 = vadd.f32 %v238, %v296
    %v298 = vand.u32 %v101, 4294901760
    %v299 = vsub.f32 %v101, %v298
    %300 = vmatmul.f32.gmra.mxu0 %v299
    %v301 = vpop.f32.mrf.mxu0
    %v302 = vadd.f32 %v242, %v301
    %v303 = vand.u32 %v104, 4294901760
    %v304 = vsub.f32 %v104, %v303
    %305 = vmatmul.f32.gmra.mxu0 %v304
    %v306 = vpop.f32.mrf.mxu0
    %v307 = vadd.f32 %v246, %v306
    %308 = vdwg.mxu0
    %309 = vmatpush.msra.mxu0 0.0
    %310 = vmatpush.msra.mxu0 0.0
    %311 = vmatpush.msra.mxu0 0.0
    %312 = vmatpush.msra.mxu0 0.0
    %313 = vmatpush.msra.mxu0 0.0
    %314 = vmatpush.msra.mxu0 0.0
    %315 = vmatpush.msra.mxu0 0.0
    %316 = vmatpush.msra.mxu0 0.0
    %317 = vmatpush.msra.mxu0 0.0
    %318 = vmatpush.msra.mxu0 0.0
    %319 = vmatpush.msra.mxu0 0.0
    %320 = vmatpush.msra.mxu0 0.0
    %321 = vmatpush.msra.mxu0 0.0
    %322 = vmatpush.msra.mxu0 0.0
    %v323 = vand.u32 %v81, 4294901760
    %324 = vmatpush.msra.mxu0 %v323
    %v325 = vand.u32 %v80, 4294901760
    %326 = vmatpush.msra.mxu0 %v325
    %v327 = vand.u32 %v83, 4294901760
    %v328 = vsub.f32 %v83, %v327
    %v329 = vand.u32 %v328, 4294901760
    %330 = vmatmul.f32.gmra.mxu0 %v329
    %v331 = vpop.f32.mrf.mxu0
    %v332 = vadd.f32 %v272, %v331
    %v333 = vand.u32 %v86, 4294901760
    %v334 = vsub.f32 %v86, %v333
    %v335 = vand.u32 %v334, 4294901760
    %336 = vmatmul.f32.gmra.mxu0 %v335
    %v337 = vpop.f32.mrf.mxu0
    %v338 = vadd.f32 %v277, %v337
    %v339 = vand.u32 %v89, 4294901760
    %v340 = vsub.f32 %v89, %v339
    %v341 = vand.u32 %v340, 4294901760
    %342 = vmatmul.f32.gmra.mxu0 %v341
    %v343 = vpop.f32.mrf.mxu0
    %v344 = vadd.f32 %v282, %v343
    %v345 = vand.u32 %v92, 4294901760
    %v346 = vsub.f32 %v92, %v345
    %v347 = vand.u32 %v346, 4294901760
    %348 = vmatmul.f32.gmra.mxu0 %v347
    %v349 = vpop.f32.mrf.mxu0
    %v350 = vadd.f32 %v287, %v349
    %v351 = vand.u32 %v95, 4294901760
    %v352 = vsub.f32 %v95, %v351
    %v353 = vand.u32 %v352, 4294901760
    %354 = vmatmul.f32.gmra.mxu0 %v353
    %v355 = vpop.f32.mrf.mxu0
    %v356 = vadd.f32 %v292, %v355
    %v357 = vand.u32 %v98, 4294901760
    %v358 = vsub.f32 %v98, %v357
    %v359 = vand.u32 %v358, 4294901760
    %360 = vmatmul.f32.gmra.mxu0 %v359
    %v361 = vpop.f32.mrf.mxu0
    %v362 = vadd.f32 %v297, %v361
    %v363 = vand.u32 %v101, 4294901760
    %v364 = vsub.f32 %v101, %v363
    %v365 = vand.u32 %v364, 4294901760
    %366 = vmatmul.f32.gmra.mxu0 %v365
    %v367 = vpop.f32.mrf.mxu0
    %v368 = vadd.f32 %v302, %v367
    %v369 = vand.u32 %v104, 4294901760
    %v370 = vsub.f32 %v104, %v369
    %v371 = vand.u32 %v370, 4294901760
    %372 = vmatmul.f32.gmra.mxu0 %v371
    %v373 = vpop.f32.mrf.mxu0
    %v374 = vadd.f32 %v307, %v373
    %375 = vdwg.mxu0
    %376 = vmatpush.msra.mxu0 0.0
    %377 = vmatpush.msra.mxu0 0.0
    %378 = vmatpush.msra.mxu0 0.0
    %379 = vmatpush.msra.mxu0 0.0
    %380 = vmatpush.msra.mxu0 0.0
    %381 = vmatpush.msra.mxu0 0.0
    %382 = vmatpush.msra.mxu0 0.0
    %383 = vmatpush.msra.mxu0 0.0
    %384 = vmatpush.msra.mxu0 0.0
    %385 = vmatpush.msra.mxu0 0.0
    %386 = vmatpush.msra.mxu0 0.0
    %387 = vmatpush.msra.mxu0 0.0
    %388 = vmatpush.msra.mxu0 0.0
    %389 = vmatpush.msra.mxu0 0.0
    %v390 = vand.u32 %v81, 4294901760
    %v391 = vsub.f32 %v81, %v390
    %v392 = vand.u32 %v391, 4294901760
    %393 = vmatpush.msra.mxu0 %v392
    %v394 = vand.u32 %v80, 4294901760
    %v395 = vsub.f32 %v80, %v394
    %v396 = vand.u32 %v395, 4294901760
    %397 = vmatpush.msra.mxu0 %v396
    %v398 = vand.u32 %v83, 4294901760
    %399 = vmatmul.f32.gmra.mxu0 %v398
    %v400 = vpop.f32.mrf.mxu0
    %v401 = vadd.f32 %v332, %v400
    %v402 = vand.u32 %v86, 4294901760
    %403 = vmatmul.f32.gmra.mxu0 %v402
    %v404 = vpop.f32.mrf.mxu0
    %v405 = vadd.f32 %v338, %v404
    %v406 = vand.u32 %v89, 4294901760
    %407 = vmatmul.f32.gmra.mxu0 %v406
    %v408 = vpop.f32.mrf.mxu0
    %v409 = vadd.f32 %v344, %v408
    %v410 = vand.u32 %v92, 4294901760
    %411 = vmatmul.f32.gmra.mxu0 %v410
    %v412 = vpop.f32.mrf.mxu0
    %v413 = vadd.f32 %v350, %v412
    %v414 = vand.u32 %v95, 4294901760
    %415 = vmatmul.f32.gmra.mxu0 %v414
    %v416 = vpop.f32.mrf.mxu0
    %v417 = vadd.f32 %v356, %v416
    %v418 = vand.u32 %v98, 4294901760
    %419 = vmatmul.f32.gmra.mxu0 %v418
    %v420 = vpop.f32.mrf.mxu0
    %v421 = vadd.f32 %v362, %v420
    %v422 = vand.u32 %v101, 4294901760
    %423 = vmatmul.f32.gmra.mxu0 %v422
    %v424 = vpop.f32.mrf.mxu0
    %v425 = vadd.f32 %v368, %v424
    %v426 = vand.u32 %v104, 4294901760
    %427 = vmatmul.f32.gmra.mxu0 %v426
    %v428 = vpop.f32.mrf.mxu0
    %v429 = vadd.f32 %v374, %v428
    %430 = vdwg.mxu0
    %431 = vmatpush.msra.mxu0 0.0
    %432 = vmatpush.msra.mxu0 0.0
    %433 = vmatpush.msra.mxu0 0.0
    %434 = vmatpush.msra.mxu0 0.0
    %435 = vmatpush.msra.mxu0 0.0
    %436 = vmatpush.msra.mxu0 0.0
    %437 = vmatpush.msra.mxu0 0.0
    %438 = vmatpush.msra.mxu0 0.0
    %439 = vmatpush.msra.mxu0 0.0
    %440 = vmatpush.msra.mxu0 0.0
    %441 = vmatpush.msra.mxu0 0.0
    %442 = vmatpush.msra.mxu0 0.0
    %443 = vmatpush.msra.mxu0 0.0
    %444 = vmatpush.msra.mxu0 0.0
    %v445 = vand.u32 %v81, 4294901760
    %446 = vmatpush.msra.mxu0 %v445
    %v447 = vand.u32 %v80, 4294901760
    %448 = vmatpush.msra.mxu0 %v447
    %v449 = vand.u32 %v83, 4294901760
    %450 = vmatmul.f32.gmra.mxu0 %v449
    %v451 = vpop.f32.mrf.mxu0
    %v452 = vadd.f32 %v401, %v451
    %v453 = vand.u32 %v86, 4294901760
    %454 = vmatmul.f32.gmra.mxu0 %v453
    %v455 = vpop.f32.mrf.mxu0
    %v456 = vadd.f32 %v405, %v455
    %v457 = vand.u32 %v89, 4294901760
    %458 = vmatmul.f32.gmra.mxu0 %v457
    %v459 = vpop.f32.mrf.mxu0
    %v460 = vadd.f32 %v409, %v459
    %v461 = vand.u32 %v92, 4294901760
    %462 = vmatmul.f32.gmra.mxu0 %v461
    %v463 = vpop.f32.mrf.mxu0
    %v464 = vadd.f32 %v413, %v463
    %v465 = vand.u32 %v95, 4294901760
    %466 = vmatmul.f32.gmra.mxu0 %v465
    %v467 = vpop.f32.mrf.mxu0
    %v468 = vadd.f32 %v417, %v467
    %v469 = vand.u32 %v98, 4294901760
    %470 = vmatmul.f32.gmra.mxu0 %v469
    %v471 = vpop.f32.mrf.mxu0
    %v472 = vadd.f32 %v421, %v471
    %v473 = vand.u32 %v101, 4294901760
    %474 = vmatmul.f32.gmra.mxu0 %v473
    %v475 = vpop.f32.mrf.mxu0
    %v476 = vadd.f32 %v425, %v475
    %v477 = vand.u32 %v104, 4294901760
    %478 = vmatmul.f32.gmra.mxu0 %v477
    %v479 = vpop.f32.mrf.mxu0
    %v480 = vadd.f32 %v429, %v479
    %481 = vdwg.mxu0
    %v482 = vld [vmem:[%s3] sm:$0x1]
    %v484 = vperm.slane %v482, 0
    %v486 = vadd.f32 %v34, %v484
    %v487 = vadd.f32 %v37, %v484
    %v488 = vadd.f32 %v40, %v484
    %v489 = vadd.f32 %v43, %v484
    %v490 = vadd.f32 %v46, %v484
    %v491 = vadd.f32 %v49, %v484
    %v492 = vadd.f32 %v52, %v484
    %v493 = vadd.f32 %v55, %v484
    %v494 = vlog2.pop %v452
    %v495 = vmul.f32 %v494, 0.6931472
    %v496 = vlog2.pop %v456
    %v497 = vmul.f32 %v496, 0.6931472
    %v498 = vlog2.pop %v460
    %v499 = vmul.f32 %v498, 0.6931472
    %v500 = vlog2.pop %v464
    %v501 = vmul.f32 %v500, 0.6931472
    %v502 = vlog2.pop %v468
    %v503 = vmul.f32 %v502, 0.6931472
    %v504 = vlog2.pop %v472
    %v505 = vmul.f32 %v504, 0.6931472
    %v506 = vlog2.pop %v476
    %v507 = vmul.f32 %v506, 0.6931472
    %v508 = vlog2.pop %v480
    %v509 = vmul.f32 %v508, 0.6931472
    %v510 = vadd.f32 %v486, %v495
    %v511 = vadd.f32 %v487, %v497
    %v512 = vadd.f32 %v488, %v499
    %v513 = vadd.f32 %v489, %v501
    %v514 = vadd.f32 %v490, %v503
    %v515 = vadd.f32 %v491, %v505
    %v516 = vadd.f32 %v492, %v507
    %v517 = vadd.f32 %v493, %v509
    %518 = vst [vmem:[#allocation2] sm:$0xff] %v510
    %519 = vst [vmem:[#allocation2 + $0x8] sm:$0xff] %v511
    %520 = vst [vmem:[#allocation2 + $0x10] sm:$0xff] %v512
    %521 = vst [vmem:[#allocation2 + $0x18] sm:$0xff] %v513
    %522 = vst [vmem:[#allocation2 + $0x20] sm:$0xff] %v514
    %523 = vst [vmem:[#allocation2 + $0x28] sm:$0xff] %v515
    %524 = vst [vmem:[#allocation2 + $0x30] sm:$0xff] %v516
    %525 = vst [vmem:[#allocation2 + $0x38] sm:$0xff] %v517
    %527 = vset.pattern.permute.xlu0 0
    %528 = vperm.xlu0 %527, %v21
    %v529 = vpop.permute.xlu0 %528
    %532 = vset.pattern.permute.xlu0 0
    %533 = vperm.xlu0 %532, %v22
    %v534 = vpop.permute.xlu0 %533
    %537 = vset.pattern.permute.xlu0 0
    %538 = vperm.xlu0 %537, %v23
    %v539 = vpop.permute.xlu0 %538
    %542 = vset.pattern.permute.xlu0 0
    %543 = vperm.xlu0 %542, %v24
    %v544 = vpop.permute.xlu0 %543
    %547 = vset.pattern.permute.xlu0 0
    %548 = vperm.xlu0 %547, %v25
    %v549 = vpop.permute.xlu0 %548
    %552 = vset.pattern.permute.xlu0 0
    %553 = vperm.xlu0 %552, %v26
    %v554 = vpop.permute.xlu0 %553
    %557 = vset.pattern.permute.xlu0 0
    %558 = vperm.xlu0 %557, %v27
    %v559 = vpop.permute.xlu0 %558
    %562 = vset.pattern.permute.xlu0 0
    %563 = vperm.xlu0 %562, %v28
    %v564 = vpop.permute.xlu0 %563
    %v566 = vperm.slane %v29, 0
    %v567 = vadd.f32 %v529, %v566
    %v568 = vadd.f32 %v534, %v566
    %v569 = vadd.f32 %v539, %v566
    %v570 = vadd.f32 %v544, %v566
    %v571 = vadd.f32 %v549, %v566
    %v572 = vadd.f32 %v554, %v566
    %v573 = vadd.f32 %v559, %v566
    %v574 = vadd.f32 %v564, %v566
    %575 = vset.pattern.permute.xlu0 1
    %576 = vperm.xlu0 %575, %v21
    %v577 = vpop.permute.xlu0 %576
    %579 = vset.pattern.permute.xlu0 1
    %580 = vperm.xlu0 %579, %v22
    %v581 = vpop.permute.xlu0 %580
    %583 = vset.pattern.permute.xlu0 1
    %584 = vperm.xlu0 %583, %v23
    %v585 = vpop.permute.xlu0 %584
    %587 = vset.pattern.permute.xlu0 1
    %588 = vperm.xlu0 %587, %v24
    %v589 = vpop.permute.xlu0 %588
    %591 = vset.pattern.permute.xlu0 1
    %592 = vperm.xlu0 %591, %v25
    %v593 = vpop.permute.xlu0 %592
    %595 = vset.pattern.permute.xlu0 1
    %596 = vperm.xlu0 %595, %v26
    %v597 = vpop.permute.xlu0 %596
    %599 = vset.pattern.permute.xlu0 1
    %600 = vperm.xlu0 %599, %v27
    %v601 = vpop.permute.xlu0 %600
    %603 = vset.pattern.permute.xlu0 1
    %604 = vperm.xlu0 %603, %v28
    %v605 = vpop.permute.xlu0 %604
    %v607 = vperm.slane %v29, 1
    %v608 = vadd.f32 %v577, %v607
    %v609 = vadd.f32 %v581, %v607
    %v610 = vadd.f32 %v585, %v607
    %v611 = vadd.f32 %v589, %v607
    %v612 = vadd.f32 %v593, %v607
    %v613 = vadd.f32 %v597, %v607
    %v614 = vadd.f32 %v601, %v607
    %v615 = vadd.f32 %v605, %v607
    %vm616 = vcmp.gt.f32.partialorder %v608, %v567
    %vm617 = vcmp.gt.f32.partialorder %v609, %v568
    %vm618 = vcmp.gt.f32.partialorder %v610, %v569
    %vm619 = vcmp.gt.f32.partialorder %v611, %v570
    %vm620 = vcmp.gt.f32.partialorder %v612, %v571
    %vm621 = vcmp.gt.f32.partialorder %v613, %v572
    %vm622 = vcmp.gt.f32.partialorder %v614, %v573
    %vm623 = vcmp.gt.f32.partialorder %v615, %v574
    %v624 = vsel %vm616, %v608, %v567
    %v625 = vsel %vm617, %v609, %v568
    %v626 = vsel %vm618, %v610, %v569
    %v627 = vsel %vm619, %v611, %v570
    %v628 = vsel %vm620, %v612, %v571
    %v629 = vsel %vm621, %v613, %v572
    %v630 = vsel %vm622, %v614, %v573
    %v631 = vsel %vm623, %v615, %v574
    %v632 = vsel %vm616, 1, 0
    %v633 = vsel %vm617, 1, 0
    %v634 = vsel %vm618, 1, 0
    %v635 = vsel %vm619, 1, 0
    %v636 = vsel %vm620, 1, 0
    %v637 = vsel %vm621, 1, 0
    %v638 = vsel %vm622, 1, 0
    %v639 = vsel %vm623, 1, 0
    %640 = vset.pattern.permute.xlu0 2
    %641 = vperm.xlu0 %640, %v21
    %v642 = vpop.permute.xlu0 %641
    %644 = vset.pattern.permute.xlu0 2
    %645 = vperm.xlu0 %644, %v22
    %v646 = vpop.permute.xlu0 %645
    %648 = vset.pattern.permute.xlu0 2
    %649 = vperm.xlu0 %648, %v23
    %v650 = vpop.permute.xlu0 %649
    %652 = vset.pattern.permute.xlu0 2
    %653 = vperm.xlu0 %652, %v24
    %v654 = vpop.permute.xlu0 %653
    %656 = vset.pattern.permute.xlu0 2
    %657 = vperm.xlu0 %656, %v25
    %v658 = vpop.permute.xlu0 %657
    %660 = vset.pattern.permute.xlu0 2
    %661 = vperm.xlu0 %660, %v26
    %v662 = vpop.permute.xlu0 %661
    %664 = vset.pattern.permute.xlu0 2
    %665 = vperm.xlu0 %664, %v27
    %v666 = vpop.permute.xlu0 %665
    %668 = vset.pattern.permute.xlu0 2
    %669 = vperm.xlu0 %668, %v28
    %v670 = vpop.permute.xlu0 %669
    %v672 = vperm.slane %v29, 2
    %v673 = vadd.f32 %v642, %v672
    %v674 = vadd.f32 %v646, %v672
    %v675 = vadd.f32 %v650, %v672
    %v676 = vadd.f32 %v654, %v672
    %v677 = vadd.f32 %v658, %v672
    %v678 = vadd.f32 %v662, %v672
    %v679 = vadd.f32 %v666, %v672
    %v680 = vadd.f32 %v670, %v672
    %vm681 = vcmp.gt.f32.partialorder %v673, %v624
    %vm682 = vcmp.gt.f32.partialorder %v674, %v625
    %vm683 = vcmp.gt.f32.partialorder %v675, %v626
    %vm684 = vcmp.gt.f32.partialorder %v676, %v627
    %vm685 = vcmp.gt.f32.partialorder %v677, %v628
    %vm686 = vcmp.gt.f32.partialorder %v678, %v629
    %vm687 = vcmp.gt.f32.partialorder %v679, %v630
    %vm688 = vcmp.gt.f32.partialorder %v680, %v631
    %v689 = vsel %vm681, %v673, %v624
    %v690 = vsel %vm682, %v674, %v625
    %v691 = vsel %vm683, %v675, %v626
    %v692 = vsel %vm684, %v676, %v627
    %v693 = vsel %vm685, %v677, %v628
    %v694 = vsel %vm686, %v678, %v629
    %v695 = vsel %vm687, %v679, %v630
    %v696 = vsel %vm688, %v680, %v631
    %v697 = vsel %vm681, 2, %v632
    %v698 = vsel %vm682, 2, %v633
    %v699 = vsel %vm683, 2, %v634
    %v700 = vsel %vm684, 2, %v635
    %v701 = vsel %vm685, 2, %v636
    %v702 = vsel %vm686, 2, %v637
    %v703 = vsel %vm687, 2, %v638
    %v704 = vsel %vm688, 2, %v639
    %705 = vset.pattern.permute.xlu0 3
    %706 = vperm.xlu0 %705, %v21
    %v707 = vpop.permute.xlu0 %706
    %709 = vset.pattern.permute.xlu0 3
    %710 = vperm.xlu0 %709, %v22
    %v711 = vpop.permute.xlu0 %710
    %713 = vset.pattern.permute.xlu0 3
    %714 = vperm.xlu0 %713, %v23
    %v715 = vpop.permute.xlu0 %714
    %717 = vset.pattern.permute.xlu0 3
    %718 = vperm.xlu0 %717, %v24
    %v719 = vpop.permute.xlu0 %718
    %721 = vset.pattern.permute.xlu0 3
    %722 = vperm.xlu0 %721, %v25
    %v723 = vpop.permute.xlu0 %722
    %725 = vset.pattern.permute.xlu0 3
    %726 = vperm.xlu0 %725, %v26
    %v727 = vpop.permute.xlu0 %726
    %729 = vset.pattern.permute.xlu0 3
    %730 = vperm.xlu0 %729, %v27
    %v731 = vpop.permute.xlu0 %730
    %733 = vset.pattern.permute.xlu0 3
    %734 = vperm.xlu0 %733, %v28
    %v735 = vpop.permute.xlu0 %734
    %v737 = vperm.slane %v29, 3
    %v738 = vadd.f32 %v707, %v737
    %v739 = vadd.f32 %v711, %v737
    %v740 = vadd.f32 %v715, %v737
    %v741 = vadd.f32 %v719, %v737
    %v742 = vadd.f32 %v723, %v737
    %v743 = vadd.f32 %v727, %v737
    %v744 = vadd.f32 %v731, %v737
    %v745 = vadd.f32 %v735, %v737
    %vm746 = vcmp.gt.f32.partialorder %v738, %v689
    %vm747 = vcmp.gt.f32.partialorder %v739, %v690
    %vm748 = vcmp.gt.f32.partialorder %v740, %v691
    %vm749 = vcmp.gt.f32.partialorder %v741, %v692
    %vm750 = vcmp.gt.f32.partialorder %v742, %v693
    %vm751 = vcmp.gt.f32.partialorder %v743, %v694
    %vm752 = vcmp.gt.f32.partialorder %v744, %v695
    %vm753 = vcmp.gt.f32.partialorder %v745, %v696
    %v754 = vsel %vm746, %v738, %v689
    %v755 = vsel %vm747, %v739, %v690
    %v756 = vsel %vm748, %v740, %v691
    %v757 = vsel %vm749, %v741, %v692
    %v758 = vsel %vm750, %v742, %v693
    %v759 = vsel %vm751, %v743, %v694
    %v760 = vsel %vm752, %v744, %v695
    %v761 = vsel %vm753, %v745, %v696
    %v762 = vsel %vm746, 3, %v697
    %v763 = vsel %vm747, 3, %v698
    %v764 = vsel %vm748, 3, %v699
    %v765 = vsel %vm749, 3, %v700
    %v766 = vsel %vm750, 3, %v701
    %v767 = vsel %vm751, 3, %v702
    %v768 = vsel %vm752, 3, %v703
    %v769 = vsel %vm753, 3, %v704
    %770 = vset.pattern.permute.xlu0 4
    %771 = vperm.xlu0 %770, %v21
    %v772 = vpop.permute.xlu0 %771
    %774 = vset.pattern.permute.xlu0 4
    %775 = vperm.xlu0 %774, %v22
    %v776 = vpop.permute.xlu0 %775
    %778 = vset.pattern.permute.xlu0 4
    %779 = vperm.xlu0 %778, %v23
    %v780 = vpop.permute.xlu0 %779
    %782 = vset.pattern.permute.xlu0 4
    %783 = vperm.xlu0 %782, %v24
    %v784 = vpop.permute.xlu0 %783
    %786 = vset.pattern.permute.xlu0 4
    %787 = vperm.xlu0 %786, %v25
    %v788 = vpop.permute.xlu0 %787
    %790 = vset.pattern.permute.xlu0 4
    %791 = vperm.xlu0 %790, %v26
    %v792 = vpop.permute.xlu0 %791
    %794 = vset.pattern.permute.xlu0 4
    %795 = vperm.xlu0 %794, %v27
    %v796 = vpop.permute.xlu0 %795
    %798 = vset.pattern.permute.xlu0 4
    %799 = vperm.xlu0 %798, %v28
    %v800 = vpop.permute.xlu0 %799
    %v802 = vperm.slane %v29, 4
    %v803 = vadd.f32 %v772, %v802
    %v804 = vadd.f32 %v776, %v802
    %v805 = vadd.f32 %v780, %v802
    %v806 = vadd.f32 %v784, %v802
    %v807 = vadd.f32 %v788, %v802
    %v808 = vadd.f32 %v792, %v802
    %v809 = vadd.f32 %v796, %v802
    %v810 = vadd.f32 %v800, %v802
    %vm811 = vcmp.gt.f32.partialorder %v803, %v754
    %vm812 = vcmp.gt.f32.partialorder %v804, %v755
    %vm813 = vcmp.gt.f32.partialorder %v805, %v756
    %vm814 = vcmp.gt.f32.partialorder %v806, %v757
    %vm815 = vcmp.gt.f32.partialorder %v807, %v758
    %vm816 = vcmp.gt.f32.partialorder %v808, %v759
    %vm817 = vcmp.gt.f32.partialorder %v809, %v760
    %vm818 = vcmp.gt.f32.partialorder %v810, %v761
    %v819 = vsel %vm811, %v803, %v754
    %v820 = vsel %vm812, %v804, %v755
    %v821 = vsel %vm813, %v805, %v756
    %v822 = vsel %vm814, %v806, %v757
    %v823 = vsel %vm815, %v807, %v758
    %v824 = vsel %vm816, %v808, %v759
    %v825 = vsel %vm817, %v809, %v760
    %v826 = vsel %vm818, %v810, %v761
    %v827 = vsel %vm811, 4, %v762
    %v828 = vsel %vm812, 4, %v763
    %v829 = vsel %vm813, 4, %v764
    %v830 = vsel %vm814, 4, %v765
    %v831 = vsel %vm815, 4, %v766
    %v832 = vsel %vm816, 4, %v767
    %v833 = vsel %vm817, 4, %v768
    %v834 = vsel %vm818, 4, %v769
    %835 = vset.pattern.permute.xlu0 5
    %836 = vperm.xlu0 %835, %v21
    %v837 = vpop.permute.xlu0 %836
    %839 = vset.pattern.permute.xlu0 5
    %840 = vperm.xlu0 %839, %v22
    %v841 = vpop.permute.xlu0 %840
    %843 = vset.pattern.permute.xlu0 5
    %844 = vperm.xlu0 %843, %v23
    %v845 = vpop.permute.xlu0 %844
    %847 = vset.pattern.permute.xlu0 5
    %848 = vperm.xlu0 %847, %v24
    %v849 = vpop.permute.xlu0 %848
    %851 = vset.pattern.permute.xlu0 5
    %852 = vperm.xlu0 %851, %v25
    %v853 = vpop.permute.xlu0 %852
    %855 = vset.pattern.permute.xlu0 5
    %856 = vperm.xlu0 %855, %v26
    %v857 = vpop.permute.xlu0 %856
    %859 = vset.pattern.permute.xlu0 5
    %860 = vperm.xlu0 %859, %v27
    %v861 = vpop.permute.xlu0 %860
    %863 = vset.pattern.permute.xlu0 5
    %864 = vperm.xlu0 %863, %v28
    %v865 = vpop.permute.xlu0 %864
    %v867 = vperm.slane %v29, 5
    %v868 = vadd.f32 %v837, %v867
    %v869 = vadd.f32 %v841, %v867
    %v870 = vadd.f32 %v845, %v867
    %v871 = vadd.f32 %v849, %v867
    %v872 = vadd.f32 %v853, %v867
    %v873 = vadd.f32 %v857, %v867
    %v874 = vadd.f32 %v861, %v867
    %v875 = vadd.f32 %v865, %v867
    %vm876 = vcmp.gt.f32.partialorder %v868, %v819
    %vm877 = vcmp.gt.f32.partialorder %v869, %v820
    %vm878 = vcmp.gt.f32.partialorder %v870, %v821
    %vm879 = vcmp.gt.f32.partialorder %v871, %v822
    %vm880 = vcmp.gt.f32.partialorder %v872, %v823
    %vm881 = vcmp.gt.f32.partialorder %v873, %v824
    %vm882 = vcmp.gt.f32.partialorder %v874, %v825
    %vm883 = vcmp.gt.f32.partialorder %v875, %v826
    %v884 = vsel %vm876, %v868, %v819
    %v885 = vsel %vm877, %v869, %v820
    %v886 = vsel %vm878, %v870, %v821
    %v887 = vsel %vm879, %v871, %v822
    %v888 = vsel %vm880, %v872, %v823
    %v889 = vsel %vm881, %v873, %v824
    %v890 = vsel %vm882, %v874, %v825
    %v891 = vsel %vm883, %v875, %v826
    %v892 = vsel %vm876, 5, %v827
    %v893 = vsel %vm877, 5, %v828
    %v894 = vsel %vm878, 5, %v829
    %v895 = vsel %vm879, 5, %v830
    %v896 = vsel %vm880, 5, %v831
    %v897 = vsel %vm881, 5, %v832
    %v898 = vsel %vm882, 5, %v833
    %v899 = vsel %vm883, 5, %v834
    %900 = vset.pattern.permute.xlu0 6
    %901 = vperm.xlu0 %900, %v21
    %v902 = vpop.permute.xlu0 %901
    %904 = vset.pattern.permute.xlu0 6
    %905 = vperm.xlu0 %904, %v22
    %v906 = vpop.permute.xlu0 %905
    %908 = vset.pattern.permute.xlu0 6
    %909 = vperm.xlu0 %908, %v23
    %v910 = vpop.permute.xlu0 %909
    %912 = vset.pattern.permute.xlu0 6
    %913 = vperm.xlu0 %912, %v24
    %v914 = vpop.permute.xlu0 %913
    %916 = vset.pattern.permute.xlu0 6
    %917 = vperm.xlu0 %916, %v25
    %v918 = vpop.permute.xlu0 %917
    %920 = vset.pattern.permute.xlu0 6
    %921 = vperm.xlu0 %920, %v26
    %v922 = vpop.permute.xlu0 %921
    %924 = vset.pattern.permute.xlu0 6
    %925 = vperm.xlu0 %924, %v27
    %v926 = vpop.permute.xlu0 %925
    %928 = vset.pattern.permute.xlu0 6
    %929 = vperm.xlu0 %928, %v28
    %v930 = vpop.permute.xlu0 %929
    %v932 = vperm.slane %v29, 6
    %v933 = vadd.f32 %v902, %v932
    %v934 = vadd.f32 %v906, %v932
    %v935 = vadd.f32 %v910, %v932
    %v936 = vadd.f32 %v914, %v932
    %v937 = vadd.f32 %v918, %v932
    %v938 = vadd.f32 %v922, %v932
    %v939 = vadd.f32 %v926, %v932
    %v940 = vadd.f32 %v930, %v932
    %vm941 = vcmp.gt.f32.partialorder %v933, %v884
    %vm942 = vcmp.gt.f32.partialorder %v934, %v885
    %vm943 = vcmp.gt.f32.partialorder %v935, %v886
    %vm944 = vcmp.gt.f32.partialorder %v936, %v887
    %vm945 = vcmp.gt.f32.partialorder %v937, %v888
    %vm946 = vcmp.gt.f32.partialorder %v938, %v889
    %vm947 = vcmp.gt.f32.partialorder %v939, %v890
    %vm948 = vcmp.gt.f32.partialorder %v940, %v891
    %v949 = vsel %vm941, %v933, %v884
    %v950 = vsel %vm942, %v934, %v885
    %v951 = vsel %vm943, %v935, %v886
    %v952 = vsel %vm944, %v936, %v887
    %v953 = vsel %vm945, %v937, %v888
    %v954 = vsel %vm946, %v938, %v889
    %v955 = vsel %vm947, %v939, %v890
    %v956 = vsel %vm948, %v940, %v891
    %v957 = vsel %vm941, 6, %v892
    %v958 = vsel %vm942, 6, %v893
    %v959 = vsel %vm943, 6, %v894
    %v960 = vsel %vm944, 6, %v895
    %v961 = vsel %vm945, 6, %v896
    %v962 = vsel %vm946, 6, %v897
    %v963 = vsel %vm947, 6, %v898
    %v964 = vsel %vm948, 6, %v899
    %965 = vset.pattern.permute.xlu0 7
    %966 = vperm.xlu0 %965, %v21
    %v967 = vpop.permute.xlu0 %966
    %969 = vset.pattern.permute.xlu0 7
    %970 = vperm.xlu0 %969, %v22
    %v971 = vpop.permute.xlu0 %970
    %973 = vset.pattern.permute.xlu0 7
    %974 = vperm.xlu0 %973, %v23
    %v975 = vpop.permute.xlu0 %974
    %977 = vset.pattern.permute.xlu0 7
    %978 = vperm.xlu0 %977, %v24
    %v979 = vpop.permute.xlu0 %978
    %981 = vset.pattern.permute.xlu0 7
    %982 = vperm.xlu0 %981, %v25
    %v983 = vpop.permute.xlu0 %982
    %985 = vset.pattern.permute.xlu0 7
    %986 = vperm.xlu0 %985, %v26
    %v987 = vpop.permute.xlu0 %986
    %989 = vset.pattern.permute.xlu0 7
    %990 = vperm.xlu0 %989, %v27
    %v991 = vpop.permute.xlu0 %990
    %993 = vset.pattern.permute.xlu0 7
    %994 = vperm.xlu0 %993, %v28
    %v995 = vpop.permute.xlu0 %994
    %v997 = vperm.slane %v29, 7
    %v998 = vadd.f32 %v967, %v997
    %v999 = vadd.f32 %v971, %v997
    %v1000 = vadd.f32 %v975, %v997
    %v1001 = vadd.f32 %v979, %v997
    %v1002 = vadd.f32 %v983, %v997
    %v1003 = vadd.f32 %v987, %v997
    %v1004 = vadd.f32 %v991, %v997
    %v1005 = vadd.f32 %v995, %v997
    %vm1006 = vcmp.gt.f32.partialorder %v998, %v949
    %vm1007 = vcmp.gt.f32.partialorder %v999, %v950
    %vm1008 = vcmp.gt.f32.partialorder %v1000, %v951
    %vm1009 = vcmp.gt.f32.partialorder %v1001, %v952
    %vm1010 = vcmp.gt.f32.partialorder %v1002, %v953
    %vm1011 = vcmp.gt.f32.partialorder %v1003, %v954
    %vm1012 = vcmp.gt.f32.partialorder %v1004, %v955
    %vm1013 = vcmp.gt.f32.partialorder %v1005, %v956
    %v1014 = vsel %vm1006, %v998, %v949
    %v1015 = vsel %vm1007, %v999, %v950
    %v1016 = vsel %vm1008, %v1000, %v951
    %v1017 = vsel %vm1009, %v1001, %v952
    %v1018 = vsel %vm1010, %v1002, %v953
    %v1019 = vsel %vm1011, %v1003, %v954
    %v1020 = vsel %vm1012, %v1004, %v955
    %v1021 = vsel %vm1013, %v1005, %v956
    %v1022 = vsel %vm1006, 7, %v957
    %v1023 = vsel %vm1007, 7, %v958
    %v1024 = vsel %vm1008, 7, %v959
    %v1025 = vsel %vm1009, 7, %v960
    %v1026 = vsel %vm1010, 7, %v961
    %v1027 = vsel %vm1011, 7, %v962
    %v1028 = vsel %vm1012, 7, %v963
    %v1029 = vsel %vm1013, 7, %v964
    %1030 = vset.pattern.permute.xlu0 8
    %1031 = vperm.xlu0 %1030, %v21
    %v1032 = vpop.permute.xlu0 %1031
    %1034 = vset.pattern.permute.xlu0 8
    %1035 = vperm.xlu0 %1034, %v22
    %v1036 = vpop.permute.xlu0 %1035
    %1038 = vset.pattern.permute.xlu0 8
    %1039 = vperm.xlu0 %1038, %v23
    %v1040 = vpop.permute.xlu0 %1039
    %1042 = vset.pattern.permute.xlu0 8
    %1043 = vperm.xlu0 %1042, %v24
    %v1044 = vpop.permute.xlu0 %1043
    %1046 = vset.pattern.permute.xlu0 8
    %1047 = vperm.xlu0 %1046, %v25
    %v1048 = vpop.permute.xlu0 %1047
    %1050 = vset.pattern.permute.xlu0 8
    %1051 = vperm.xlu0 %1050, %v26
    %v1052 = vpop.permute.xlu0 %1051
    %1054 = vset.pattern.permute.xlu0 8
    %1055 = vperm.xlu0 %1054, %v27
    %v1056 = vpop.permute.xlu0 %1055
    %1058 = vset.pattern.permute.xlu0 8
    %1059 = vperm.xlu0 %1058, %v28
    %v1060 = vpop.permute.xlu0 %1059
    %v1062 = vperm.slane %v30, 0
    %v1063 = vadd.f32 %v1032, %v1062
    %v1064 = vadd.f32 %v1036, %v1062
    %v1065 = vadd.f32 %v1040, %v1062
    %v1066 = vadd.f32 %v1044, %v1062
    %v1067 = vadd.f32 %v1048, %v1062
    %v1068 = vadd.f32 %v1052, %v1062
    %v1069 = vadd.f32 %v1056, %v1062
    %v1070 = vadd.f32 %v1060, %v1062
    %vm1071 = vcmp.gt.f32.partialorder %v1063, %v1014
    %vm1072 = vcmp.gt.f32.partialorder %v1064, %v1015
    %vm1073 = vcmp.gt.f32.partialorder %v1065, %v1016
    %vm1074 = vcmp.gt.f32.partialorder %v1066, %v1017
    %vm1075 = vcmp.gt.f32.partialorder %v1067, %v1018
    %vm1076 = vcmp.gt.f32.partialorder %v1068, %v1019
    %vm1077 = vcmp.gt.f32.partialorder %v1069, %v1020
    %vm1078 = vcmp.gt.f32.partialorder %v1070, %v1021
    %v1079 = vsel %vm1071, %v1063, %v1014
    %v1080 = vsel %vm1072, %v1064, %v1015
    %v1081 = vsel %vm1073, %v1065, %v1016
    %v1082 = vsel %vm1074, %v1066, %v1017
    %v1083 = vsel %vm1075, %v1067, %v1018
    %v1084 = vsel %vm1076, %v1068, %v1019
    %v1085 = vsel %vm1077, %v1069, %v1020
    %v1086 = vsel %vm1078, %v1070, %v1021
    %v1087 = vsel %vm1071, 8, %v1022
    %v1088 = vsel %vm1072, 8, %v1023
    %v1089 = vsel %vm1073, 8, %v1024
    %v1090 = vsel %vm1074, 8, %v1025
    %v1091 = vsel %vm1075, 8, %v1026
    %v1092 = vsel %vm1076, 8, %v1027
    %v1093 = vsel %vm1077, 8, %v1028
    %v1094 = vsel %vm1078, 8, %v1029
    %1095 = vset.pattern.permute.xlu0 9
    %1096 = vperm.xlu0 %1095, %v21
    %v1097 = vpop.permute.xlu0 %1096
    %1099 = vset.pattern.permute.xlu0 9
    %1100 = vperm.xlu0 %1099, %v22
    %v1101 = vpop.permute.xlu0 %1100
    %1103 = vset.pattern.permute.xlu0 9
    %1104 = vperm.xlu0 %1103, %v23
    %v1105 = vpop.permute.xlu0 %1104
    %1107 = vset.pattern.permute.xlu0 9
    %1108 = vperm.xlu0 %1107, %v24
    %v1109 = vpop.permute.xlu0 %1108
    %1111 = vset.pattern.permute.xlu0 9
    %1112 = vperm.xlu0 %1111, %v25
    %v1113 = vpop.permute.xlu0 %1112
    %1115 = vset.pattern.permute.xlu0 9
    %1116 = vperm.xlu0 %1115, %v26
    %v1117 = vpop.permute.xlu0 %1116
    %1119 = vset.pattern.permute.xlu0 9
    %1120 = vperm.xlu0 %1119, %v27
    %v1121 = vpop.permute.xlu0 %1120
    %1123 = vset.pattern.permute.xlu0 9
    %1124 = vperm.xlu0 %1123, %v28
    %v1125 = vpop.permute.xlu0 %1124
    %v1127 = vperm.slane %v30, 1
    %v1128 = vadd.f32 %v1097, %v1127
    %v1129 = vadd.f32 %v1101, %v1127
    %v1130 = vadd.f32 %v1105, %v1127
    %v1131 = vadd.f32 %v1109, %v1127
    %v1132 = vadd.f32 %v1113, %v1127
    %v1133 = vadd.f32 %v1117, %v1127
    %v1134 = vadd.f32 %v1121, %v1127
    %v1135 = vadd.f32 %v1125, %v1127
    %vm1136 = vcmp.gt.f32.partialorder %v1128, %v1079
    %vm1137 = vcmp.gt.f32.partialorder %v1129, %v1080
    %vm1138 = vcmp.gt.f32.partialorder %v1130, %v1081
    %vm1139 = vcmp.gt.f32.partialorder %v1131, %v1082
    %vm1140 = vcmp.gt.f32.partialorder %v1132, %v1083
    %vm1141 = vcmp.gt.f32.partialorder %v1133, %v1084
    %vm1142 = vcmp.gt.f32.partialorder %v1134, %v1085
    %vm1143 = vcmp.gt.f32.partialorder %v1135, %v1086
    %v1144 = vsel %vm1136, %v1128, %v1079
    %v1145 = vsel %vm1137, %v1129, %v1080
    %v1146 = vsel %vm1138, %v1130, %v1081
    %v1147 = vsel %vm1139, %v1131, %v1082
    %v1148 = vsel %vm1140, %v1132, %v1083
    %v1149 = vsel %vm1141, %v1133, %v1084
    %v1150 = vsel %vm1142, %v1134, %v1085
    %v1151 = vsel %vm1143, %v1135, %v1086
    %v1152 = vsel %vm1136, 9, %v1087
    %v1153 = vsel %vm1137, 9, %v1088
    %v1154 = vsel %vm1138, 9, %v1089
    %v1155 = vsel %vm1139, 9, %v1090
    %v1156 = vsel %vm1140, 9, %v1091
    %v1157 = vsel %vm1141, 9, %v1092
    %v1158 = vsel %vm1142, 9, %v1093
    %v1159 = vsel %vm1143, 9, %v1094
    %1160 = vset.pattern.permute.xlu0 10
    %1161 = vperm.xlu0 %1160, %v21
    %v1162 = vpop.permute.xlu0 %1161
    %1164 = vset.pattern.permute.xlu0 10
    %1165 = vperm.xlu0 %1164, %v22
    %v1166 = vpop.permute.xlu0 %1165
    %1168 = vset.pattern.permute.xlu0 10
    %1169 = vperm.xlu0 %1168, %v23
    %v1170 = vpop.permute.xlu0 %1169
    %1172 = vset.pattern.permute.xlu0 10
    %1173 = vperm.xlu0 %1172, %v24
    %v1174 = vpop.permute.xlu0 %1173
    %1176 = vset.pattern.permute.xlu0 10
    %1177 = vperm.xlu0 %1176, %v25
    %v1178 = vpop.permute.xlu0 %1177
    %1180 = vset.pattern.permute.xlu0 10
    %1181 = vperm.xlu0 %1180, %v26
    %v1182 = vpop.permute.xlu0 %1181
    %1184 = vset.pattern.permute.xlu0 10
    %1185 = vperm.xlu0 %1184, %v27
    %v1186 = vpop.permute.xlu0 %1185
    %1188 = vset.pattern.permute.xlu0 10
    %1189 = vperm.xlu0 %1188, %v28
    %v1190 = vpop.permute.xlu0 %1189
    %v1192 = vperm.slane %v30, 2
    %v1193 = vadd.f32 %v1162, %v1192
    %v1194 = vadd.f32 %v1166, %v1192
    %v1195 = vadd.f32 %v1170, %v1192
    %v1196 = vadd.f32 %v1174, %v1192
    %v1197 = vadd.f32 %v1178, %v1192
    %v1198 = vadd.f32 %v1182, %v1192
    %v1199 = vadd.f32 %v1186, %v1192
    %v1200 = vadd.f32 %v1190, %v1192
    %vm1201 = vcmp.gt.f32.partialorder %v1193, %v1144
    %vm1202 = vcmp.gt.f32.partialorder %v1194, %v1145
    %vm1203 = vcmp.gt.f32.partialorder %v1195, %v1146
    %vm1204 = vcmp.gt.f32.partialorder %v1196, %v1147
    %vm1205 = vcmp.gt.f32.partialorder %v1197, %v1148
    %vm1206 = vcmp.gt.f32.partialorder %v1198, %v1149
    %vm1207 = vcmp.gt.f32.partialorder %v1199, %v1150
    %vm1208 = vcmp.gt.f32.partialorder %v1200, %v1151
    %v1209 = vsel %vm1201, %v1193, %v1144
    %v1210 = vsel %vm1202, %v1194, %v1145
    %v1211 = vsel %vm1203, %v1195, %v1146
    %v1212 = vsel %vm1204, %v1196, %v1147
    %v1213 = vsel %vm1205, %v1197, %v1148
    %v1214 = vsel %vm1206, %v1198, %v1149
    %v1215 = vsel %vm1207, %v1199, %v1150
    %v1216 = vsel %vm1208, %v1200, %v1151
    %v1217 = vsel %vm1201, 10, %v1152
    %v1218 = vsel %vm1202, 10, %v1153
    %v1219 = vsel %vm1203, 10, %v1154
    %v1220 = vsel %vm1204, 10, %v1155
    %v1221 = vsel %vm1205, 10, %v1156
    %v1222 = vsel %vm1206, 10, %v1157
    %v1223 = vsel %vm1207, 10, %v1158
    %v1224 = vsel %vm1208, 10, %v1159
    %1225 = vset.pattern.permute.xlu0 11
    %1226 = vperm.xlu0 %1225, %v21
    %v1227 = vpop.permute.xlu0 %1226
    %1229 = vset.pattern.permute.xlu0 11
    %1230 = vperm.xlu0 %1229, %v22
    %v1231 = vpop.permute.xlu0 %1230
    %1233 = vset.pattern.permute.xlu0 11
    %1234 = vperm.xlu0 %1233, %v23
    %v1235 = vpop.permute.xlu0 %1234
    %1237 = vset.pattern.permute.xlu0 11
    %1238 = vperm.xlu0 %1237, %v24
    %v1239 = vpop.permute.xlu0 %1238
    %1241 = vset.pattern.permute.xlu0 11
    %1242 = vperm.xlu0 %1241, %v25
    %v1243 = vpop.permute.xlu0 %1242
    %1245 = vset.pattern.permute.xlu0 11
    %1246 = vperm.xlu0 %1245, %v26
    %v1247 = vpop.permute.xlu0 %1246
    %1249 = vset.pattern.permute.xlu0 11
    %1250 = vperm.xlu0 %1249, %v27
    %v1251 = vpop.permute.xlu0 %1250
    %1253 = vset.pattern.permute.xlu0 11
    %1254 = vperm.xlu0 %1253, %v28
    %v1255 = vpop.permute.xlu0 %1254
    %v1257 = vperm.slane %v30, 3
    %v1258 = vadd.f32 %v1227, %v1257
    %v1259 = vadd.f32 %v1231, %v1257
    %v1260 = vadd.f32 %v1235, %v1257
    %v1261 = vadd.f32 %v1239, %v1257
    %v1262 = vadd.f32 %v1243, %v1257
    %v1263 = vadd.f32 %v1247, %v1257
    %v1264 = vadd.f32 %v1251, %v1257
    %v1265 = vadd.f32 %v1255, %v1257
    %vm1266 = vcmp.gt.f32.partialorder %v1258, %v1209
    %vm1267 = vcmp.gt.f32.partialorder %v1259, %v1210
    %vm1268 = vcmp.gt.f32.partialorder %v1260, %v1211
    %vm1269 = vcmp.gt.f32.partialorder %v1261, %v1212
    %vm1270 = vcmp.gt.f32.partialorder %v1262, %v1213
    %vm1271 = vcmp.gt.f32.partialorder %v1263, %v1214
    %vm1272 = vcmp.gt.f32.partialorder %v1264, %v1215
    %vm1273 = vcmp.gt.f32.partialorder %v1265, %v1216
    %v1274 = vsel %vm1266, %v1258, %v1209
    %v1275 = vsel %vm1267, %v1259, %v1210
    %v1276 = vsel %vm1268, %v1260, %v1211
    %v1277 = vsel %vm1269, %v1261, %v1212
    %v1278 = vsel %vm1270, %v1262, %v1213
    %v1279 = vsel %vm1271, %v1263, %v1214
    %v1280 = vsel %vm1272, %v1264, %v1215
    %v1281 = vsel %vm1273, %v1265, %v1216
    %v1282 = vsel %vm1266, 11, %v1217
    %v1283 = vsel %vm1267, 11, %v1218
    %v1284 = vsel %vm1268, 11, %v1219
    %v1285 = vsel %vm1269, 11, %v1220
    %v1286 = vsel %vm1270, 11, %v1221
    %v1287 = vsel %vm1271, 11, %v1222
    %v1288 = vsel %vm1272, 11, %v1223
    %v1289 = vsel %vm1273, 11, %v1224
    %1290 = vset.pattern.permute.xlu0 12
    %1291 = vperm.xlu0 %1290, %v21
    %v1292 = vpop.permute.xlu0 %1291
    %1294 = vset.pattern.permute.xlu0 12
    %1295 = vperm.xlu0 %1294, %v22
    %v1296 = vpop.permute.xlu0 %1295
    %1298 = vset.pattern.permute.xlu0 12
    %1299 = vperm.xlu0 %1298, %v23
    %v1300 = vpop.permute.xlu0 %1299
    %1302 = vset.pattern.permute.xlu0 12
    %1303 = vperm.xlu0 %1302, %v24
    %v1304 = vpop.permute.xlu0 %1303
    %1306 = vset.pattern.permute.xlu0 12
    %1307 = vperm.xlu0 %1306, %v25
    %v1308 = vpop.permute.xlu0 %1307
    %1310 = vset.pattern.permute.xlu0 12
    %1311 = vperm.xlu0 %1310, %v26
    %v1312 = vpop.permute.xlu0 %1311
    %1314 = vset.pattern.permute.xlu0 12
    %1315 = vperm.xlu0 %1314, %v27
    %v1316 = vpop.permute.xlu0 %1315
    %1318 = vset.pattern.permute.xlu0 12
    %1319 = vperm.xlu0 %1318, %v28
    %v1320 = vpop.permute.xlu0 %1319
    %v1322 = vperm.slane %v30, 4
    %v1323 = vadd.f32 %v1292, %v1322
    %v1324 = vadd.f32 %v1296, %v1322
    %v1325 = vadd.f32 %v1300, %v1322
    %v1326 = vadd.f32 %v1304, %v1322
    %v1327 = vadd.f32 %v1308, %v1322
    %v1328 = vadd.f32 %v1312, %v1322
    %v1329 = vadd.f32 %v1316, %v1322
    %v1330 = vadd.f32 %v1320, %v1322
    %vm1331 = vcmp.gt.f32.partialorder %v1323, %v1274
    %vm1332 = vcmp.gt.f32.partialorder %v1324, %v1275
    %vm1333 = vcmp.gt.f32.partialorder %v1325, %v1276
    %vm1334 = vcmp.gt.f32.partialorder %v1326, %v1277
    %vm1335 = vcmp.gt.f32.partialorder %v1327, %v1278
    %vm1336 = vcmp.gt.f32.partialorder %v1328, %v1279
    %vm1337 = vcmp.gt.f32.partialorder %v1329, %v1280
    %vm1338 = vcmp.gt.f32.partialorder %v1330, %v1281
    %v1339 = vsel %vm1331, %v1323, %v1274
    %v1340 = vsel %vm1332, %v1324, %v1275
    %v1341 = vsel %vm1333, %v1325, %v1276
    %v1342 = vsel %vm1334, %v1326, %v1277
    %v1343 = vsel %vm1335, %v1327, %v1278
    %v1344 = vsel %vm1336, %v1328, %v1279
    %v1345 = vsel %vm1337, %v1329, %v1280
    %v1346 = vsel %vm1338, %v1330, %v1281
    %v1347 = vsel %vm1331, 12, %v1282
    %v1348 = vsel %vm1332, 12, %v1283
    %v1349 = vsel %vm1333, 12, %v1284
    %v1350 = vsel %vm1334, 12, %v1285
    %v1351 = vsel %vm1335, 12, %v1286
    %v1352 = vsel %vm1336, 12, %v1287
    %v1353 = vsel %vm1337, 12, %v1288
    %v1354 = vsel %vm1338, 12, %v1289
    %1355 = vset.pattern.permute.xlu0 13
    %1356 = vperm.xlu0 %1355, %v21
    %v1357 = vpop.permute.xlu0 %1356
    %1359 = vset.pattern.permute.xlu0 13
    %1360 = vperm.xlu0 %1359, %v22
    %v1361 = vpop.permute.xlu0 %1360
    %1363 = vset.pattern.permute.xlu0 13
    %1364 = vperm.xlu0 %1363, %v23
    %v1365 = vpop.permute.xlu0 %1364
    %1367 = vset.pattern.permute.xlu0 13
    %1368 = vperm.xlu0 %1367, %v24
    %v1369 = vpop.permute.xlu0 %1368
    %1371 = vset.pattern.permute.xlu0 13
    %1372 = vperm.xlu0 %1371, %v25
    %v1373 = vpop.permute.xlu0 %1372
    %1375 = vset.pattern.permute.xlu0 13
    %1376 = vperm.xlu0 %1375, %v26
    %v1377 = vpop.permute.xlu0 %1376
    %1379 = vset.pattern.permute.xlu0 13
    %1380 = vperm.xlu0 %1379, %v27
    %v1381 = vpop.permute.xlu0 %1380
    %1383 = vset.pattern.permute.xlu0 13
    %1384 = vperm.xlu0 %1383, %v28
    %v1385 = vpop.permute.xlu0 %1384
    %v1387 = vperm.slane %v30, 5
    %v1388 = vadd.f32 %v1357, %v1387
    %v1389 = vadd.f32 %v1361, %v1387
    %v1390 = vadd.f32 %v1365, %v1387
    %v1391 = vadd.f32 %v1369, %v1387
    %v1392 = vadd.f32 %v1373, %v1387
    %v1393 = vadd.f32 %v1377, %v1387
    %v1394 = vadd.f32 %v1381, %v1387
    %v1395 = vadd.f32 %v1385, %v1387
    %vm1396 = vcmp.gt.f32.partialorder %v1388, %v1339
    %vm1397 = vcmp.gt.f32.partialorder %v1389, %v1340
    %vm1398 = vcmp.gt.f32.partialorder %v1390, %v1341
    %vm1399 = vcmp.gt.f32.partialorder %v1391, %v1342
    %vm1400 = vcmp.gt.f32.partialorder %v1392, %v1343
    %vm1401 = vcmp.gt.f32.partialorder %v1393, %v1344
    %vm1402 = vcmp.gt.f32.partialorder %v1394, %v1345
    %vm1403 = vcmp.gt.f32.partialorder %v1395, %v1346
    %v1404 = vsel %vm1396, %v1388, %v1339
    %v1405 = vsel %vm1397, %v1389, %v1340
    %v1406 = vsel %vm1398, %v1390, %v1341
    %v1407 = vsel %vm1399, %v1391, %v1342
    %v1408 = vsel %vm1400, %v1392, %v1343
    %v1409 = vsel %vm1401, %v1393, %v1344
    %v1410 = vsel %vm1402, %v1394, %v1345
    %v1411 = vsel %vm1403, %v1395, %v1346
    %v1412 = vsel %vm1396, 13, %v1347
    %v1413 = vsel %vm1397, 13, %v1348
    %v1414 = vsel %vm1398, 13, %v1349
    %v1415 = vsel %vm1399, 13, %v1350
    %v1416 = vsel %vm1400, 13, %v1351
    %v1417 = vsel %vm1401, 13, %v1352
    %v1418 = vsel %vm1402, 13, %v1353
    %v1419 = vsel %vm1403, 13, %v1354
    %1420 = vset.pattern.permute.xlu0 14
    %1421 = vperm.xlu0 %1420, %v21
    %v1422 = vpop.permute.xlu0 %1421
    %1424 = vset.pattern.permute.xlu0 14
    %1425 = vperm.xlu0 %1424, %v22
    %v1426 = vpop.permute.xlu0 %1425
    %1428 = vset.pattern.permute.xlu0 14
    %1429 = vperm.xlu0 %1428, %v23
    %v1430 = vpop.permute.xlu0 %1429
    %1432 = vset.pattern.permute.xlu0 14
    %1433 = vperm.xlu0 %1432, %v24
    %v1434 = vpop.permute.xlu0 %1433
    %1436 = vset.pattern.permute.xlu0 14
    %1437 = vperm.xlu0 %1436, %v25
    %v1438 = vpop.permute.xlu0 %1437
    %1440 = vset.pattern.permute.xlu0 14
    %1441 = vperm.xlu0 %1440, %v26
    %v1442 = vpop.permute.xlu0 %1441
    %1444 = vset.pattern.permute.xlu0 14
    %1445 = vperm.xlu0 %1444, %v27
    %v1446 = vpop.permute.xlu0 %1445
    %1448 = vset.pattern.permute.xlu0 14
    %1449 = vperm.xlu0 %1448, %v28
    %v1450 = vpop.permute.xlu0 %1449
    %v1452 = vperm.slane %v30, 6
    %v1453 = vadd.f32 %v1422, %v1452
    %v1454 = vadd.f32 %v1426, %v1452
    %v1455 = vadd.f32 %v1430, %v1452
    %v1456 = vadd.f32 %v1434, %v1452
    %v1457 = vadd.f32 %v1438, %v1452
    %v1458 = vadd.f32 %v1442, %v1452
    %v1459 = vadd.f32 %v1446, %v1452
    %v1460 = vadd.f32 %v1450, %v1452
    %vm1461 = vcmp.gt.f32.partialorder %v1453, %v1404
    %vm1462 = vcmp.gt.f32.partialorder %v1454, %v1405
    %vm1463 = vcmp.gt.f32.partialorder %v1455, %v1406
    %vm1464 = vcmp.gt.f32.partialorder %v1456, %v1407
    %vm1465 = vcmp.gt.f32.partialorder %v1457, %v1408
    %vm1466 = vcmp.gt.f32.partialorder %v1458, %v1409
    %vm1467 = vcmp.gt.f32.partialorder %v1459, %v1410
    %vm1468 = vcmp.gt.f32.partialorder %v1460, %v1411
    %v1469 = vsel %vm1461, %v1453, %v1404
    %v1470 = vsel %vm1462, %v1454, %v1405
    %v1471 = vsel %vm1463, %v1455, %v1406
    %v1472 = vsel %vm1464, %v1456, %v1407
    %v1473 = vsel %vm1465, %v1457, %v1408
    %v1474 = vsel %vm1466, %v1458, %v1409
    %v1475 = vsel %vm1467, %v1459, %v1410
    %v1476 = vsel %vm1468, %v1460, %v1411
    %v1477 = vsel %vm1461, 14, %v1412
    %v1478 = vsel %vm1462, 14, %v1413
    %v1479 = vsel %vm1463, 14, %v1414
    %v1480 = vsel %vm1464, 14, %v1415
    %v1481 = vsel %vm1465, 14, %v1416
    %v1482 = vsel %vm1466, 14, %v1417
    %v1483 = vsel %vm1467, 14, %v1418
    %v1484 = vsel %vm1468, 14, %v1419
    %1485 = vset.pattern.permute.xlu0 15
    %1486 = vperm.xlu0 %1485, %v21
    %v1487 = vpop.permute.xlu0 %1486
    %1489 = vset.pattern.permute.xlu0 15
    %1490 = vperm.xlu0 %1489, %v22
    %v1491 = vpop.permute.xlu0 %1490
    %1493 = vset.pattern.permute.xlu0 15
    %1494 = vperm.xlu0 %1493, %v23
    %v1495 = vpop.permute.xlu0 %1494
    %1497 = vset.pattern.permute.xlu0 15
    %1498 = vperm.xlu0 %1497, %v24
    %v1499 = vpop.permute.xlu0 %1498
    %1501 = vset.pattern.permute.xlu0 15
    %1502 = vperm.xlu0 %1501, %v25
    %v1503 = vpop.permute.xlu0 %1502
    %1505 = vset.pattern.permute.xlu0 15
    %1506 = vperm.xlu0 %1505, %v26
    %v1507 = vpop.permute.xlu0 %1506
    %1509 = vset.pattern.permute.xlu0 15
    %1510 = vperm.xlu0 %1509, %v27
    %v1511 = vpop.permute.xlu0 %1510
    %1513 = vset.pattern.permute.xlu0 15
    %1514 = vperm.xlu0 %1513, %v28
    %v1515 = vpop.permute.xlu0 %1514
    %v1517 = vperm.slane %v30, 7
    %v1518 = vadd.f32 %v1487, %v1517
    %v1519 = vadd.f32 %v1491, %v1517
    %v1520 = vadd.f32 %v1495, %v1517
    %v1521 = vadd.f32 %v1499, %v1517
    %v1522 = vadd.f32 %v1503, %v1517
    %v1523 = vadd.f32 %v1507, %v1517
    %v1524 = vadd.f32 %v1511, %v1517
    %v1525 = vadd.f32 %v1515, %v1517
    %vm1526 = vcmp.gt.f32.partialorder %v1518, %v1469
    %vm1527 = vcmp.gt.f32.partialorder %v1519, %v1470
    %vm1528 = vcmp.gt.f32.partialorder %v1520, %v1471
    %vm1529 = vcmp.gt.f32.partialorder %v1521, %v1472
    %vm1530 = vcmp.gt.f32.partialorder %v1522, %v1473
    %vm1531 = vcmp.gt.f32.partialorder %v1523, %v1474
    %vm1532 = vcmp.gt.f32.partialorder %v1524, %v1475
    %vm1533 = vcmp.gt.f32.partialorder %v1525, %v1476
    %v1534 = vsel %vm1526, 15, %v1477
    %v1535 = vsel %vm1527, 15, %v1478
    %v1536 = vsel %vm1528, 15, %v1479
    %v1537 = vsel %vm1529, 15, %v1480
    %v1538 = vsel %vm1530, 15, %v1481
    %v1539 = vsel %vm1531, 15, %v1482
    %v1540 = vsel %vm1532, 15, %v1483
    %v1541 = vsel %vm1533, 15, %v1484
    %1542 = vst [vmem:[#allocation4] sm:$0xff] %v1534
    %1543 = vst [vmem:[#allocation4 + $0x8] sm:$0xff] %v1535
    %1544 = vst [vmem:[#allocation4 + $0x10] sm:$0xff] %v1536
    %1545 = vst [vmem:[#allocation4 + $0x18] sm:$0xff] %v1537
    %1546 = vst [vmem:[#allocation4 + $0x20] sm:$0xff] %v1538
    %1547 = vst [vmem:[#allocation4 + $0x28] sm:$0xff] %v1539
    %1548 = vst [vmem:[#allocation4 + $0x30] sm:$0xff] %v1540
    %1549 = vst [vmem:[#allocation4 + $0x38] sm:$0xff] %v1541
    // Predicated region
    $region18: #{tpu_custom_call.1} parent=1 // pred_check
      _
    $region19: #{tpu_custom_call.1} parent=1 // pred_check_branch
      %1551 = sbr.rel (0) target = $region21
    $region20: #{tpu_custom_call.1} parent=1 // pred_region
      %1553 = vsyncadd [#allocation3], 0
      %s1554 = sshll.u32 [#allocation2], 4
      %s1555 = int_to_ptr.vmem [resolvable:$true] %s1554
      %s1556 = sshll.u32 %s4, 4
      %s1557 = int_to_ptr.hbm [resolvable:$true] %s1556
      %1562 = dma.vmem_to_hbm [thread:$0]  %s1555, 1024, %s1557, [#allocation3], 128, 128, 8
    $region21: #{tpu_custom_call.1} parent=1 // pred_fallthru
      _
    // Predicated region
    $region22: #{tpu_custom_call.1} parent=1 // pred_check
      _
    $region23: #{tpu_custom_call.1} parent=1 // pred_check_branch
      %1564 = sbr.rel (0) target = $region25
    $region24: #{tpu_custom_call.1} parent=1 // pred_region
      %1566 = vsyncadd [#allocation5], 0
      %s1567 = sshll.u32 [#allocation4], 4
      %s1568 = int_to_ptr.vmem [resolvable:$true] %s1567
      %s1569 = sshll.u32 %s5, 4
      %s1570 = int_to_ptr.hbm [resolvable:$true] %s1569
      %1575 = dma.vmem_to_hbm [thread:$0]  %s1568, 1024, %s1570, [#allocation5], 128, 128, 8
    $region25: #{tpu_custom_call.1} parent=1 // pred_fallthru
      _
    // Predicated region
    $region26: #{tpu_custom_call.1} parent=1 // pred_check
      _
    $region27: #{tpu_custom_call.1} parent=1 // pred_check_branch
      %1577 = sbr.rel (0) target = $region29
    $region28: #{tpu_custom_call.1} parent=1 // pred_region
      %1579 = dma.done [#allocation3], 1024
    $region29: #{tpu_custom_call.1} parent=1 // pred_fallthru
      _
    // Predicated region
    $region30: #{tpu_custom_call.1} parent=1 // pred_check
      _
    $region31: #{tpu_custom_call.1} parent=1 // pred_check_branch
      %1581 = sbr.rel (0) target = $region33
    $region32: #{tpu_custom_call.1} parent=1 // pred_region
      %1583 = dma.done [#allocation5], 1024
    $region33: #{tpu_custom_call.1} parent=1 // pred_fallthru
      _
    %1584 = vsyncpa [#allocation3], 1
    %1585 = vsyncpa [#allocation5], 1

</llo_original>
